<compile_context>
chip_gen: v7x
topology: tpu7x:2x2x1
jax: 0.10.0
libtpu: 0.0.40
codegen_flags: <defaults>
</compile_context>

<pallas_src>
import numpy as np
import jax
import jax.numpy as jnp
from jax.experimental import pallas as pl
from jax.experimental.pallas import tpu as pltpu


# ----------------------------------------------------------------------------
# State-space matrices (LMU "A" and "B"), discretized with ZOH (cont2discrete)
# ----------------------------------------------------------------------------
def _expm(M, terms=30):
    """Scaling-and-squaring + Taylor series matrix exponential (float64)."""
    n = M.shape[0]
    norm = np.linalg.norm(M, ord=np.inf)
    s = 0
    if norm > 0:
        s = max(0, int(np.ceil(np.log2(norm))) + 1)
    Ms = M / (2.0 ** s)
    E = np.eye(n, dtype=np.float64)
    term = np.eye(n, dtype=np.float64)
    for k in range(1, terms + 1):
        term = term @ Ms / k
        E = E + term
    for _ in range(s):
        E = E @ E
    return E


def state_space_matrices(memory_size, theta):
    Q = np.arange(memory_size, dtype=np.float64).reshape(-1, 1)
    R = (2 * Q + 1) / theta
    i, j = np.meshgrid(Q.ravel(), Q.ravel(), indexing="ij")
    A = R * np.where(i < j, -1.0, (-1.0) ** (i - j + 1))
    B = R * (-1.0) ** Q                                   # (M, 1)
    # ZOH discretization with dt = 1.0  (scipy.signal.cont2discrete 'zoh')
    n = memory_size
    em = np.zeros((n + 1, n + 1), dtype=np.float64)
    em[:n, :n] = A
    em[:n, n:] = B
    ms = _expm(em * 1.0)
    return ms[:n, :n].astype(np.float32), ms[:n, n:].astype(np.float32)


# ----------------------------------------------------------------------------
# Deterministic parameter initialization (shapes from the PyTorch module)
# ----------------------------------------------------------------------------
def init_params(key, input_size, hidden_size, memory_size, theta, output_size):
    ks = jax.random.split(key, 8)

    def lecun_uniform(k, shape, fan_in):
        limit = np.sqrt(3.0 / fan_in)
        return jax.random.uniform(k, shape, jnp.float32, -limit, limit)

    def xavier_normal(k, shape):
        fan_out, fan_in = shape
        std = np.sqrt(2.0 / (fan_in + fan_out))
        return std * jax.random.normal(k, shape, jnp.float32)

    A, B = state_space_matrices(memory_size, theta)
    return {
        "A": jnp.asarray(A),                                        # (M, M)
        "B": jnp.asarray(B),                                        # (M, 1)
        "e_x": lecun_uniform(ks[0], (1, input_size), input_size),   # (1, I)
        "e_h": lecun_uniform(ks[1], (1, hidden_size), hidden_size), # (1, H)
        "e_m": jnp.zeros((1, memory_size), jnp.float32),            # (1, M)
        "W_x": xavier_normal(ks[2], (hidden_size, input_size)),     # (H, I)
        "W_h": xavier_normal(ks[3], (hidden_size, hidden_size)),    # (H, H)
        "W_m": xavier_normal(ks[4], (hidden_size, memory_size)),    # (H, M)
        "fc_w": lecun_uniform(ks[5], (output_size, hidden_size), hidden_size),
        "fc_b": lecun_uniform(ks[6], (1, output_size), hidden_size),
    }


# ----------------------------------------------------------------------------
# One-time host-side weight folding (float64 numpy; NOT re-run per forward).
#
#   u      = x@e_x.T + h@e_h.T + m@e_m.T
#   m_new  = m@A.T + u@B.T = x@Px + h@Ph + m@Pm
#   h_new  = tanh(x@(W_x.T + Px@W_m.T) + h@(W_h.T + Ph@W_m.T) + m@(Pm@W_m.T))
#
# Column order of every folded block is [h-part | m-part] so the loop carry
# [h | m] and the matmul output share one layout:
#   W_x   : (I,   H+M) = [W_x.T + Px@W_m.T | Px]
#   W_rec : (H+M, H+M) = [[W_h.T + Ph@W_m.T | Ph],
#                         [      Pm@W_m.T   | Pm]]
# ----------------------------------------------------------------------------
def fold_params(params):
    p = {k: np.asarray(v, np.float64) for k, v in params.items()}
    BT = p["B"].T                                   # (1, M)
    Px = p["e_x"].T @ BT                            # (I, M)
    Ph = p["e_h"].T @ BT                            # (H, M)
    Pm = p["A"].T + p["e_m"].T @ BT                 # (M, M)
    WxT, WhT, WmT = p["W_x"].T, p["W_h"].T, p["W_m"].T
    w_x = np.concatenate([WxT + Px @ WmT, Px], axis=1)          # (I,   H+M)
    w_h = np.concatenate([WhT + Ph @ WmT, Ph], axis=1)          # (H,   H+M)
    w_m = np.concatenate([Pm @ WmT, Pm], axis=1)                # (M,   H+M)
    w_rec = np.concatenate([w_h, w_m], axis=0)                  # (H+M, H+M)
    return (jnp.asarray(w_x, jnp.float32),
            jnp.asarray(w_rec, jnp.float32),
            jnp.asarray(p["fc_w"].T, jnp.float32),              # (H, O)
            jnp.asarray(p["fc_b"], jnp.float32))                # (1, O)


# ----------------------------------------------------------------------------
# Pallas kernel: the entire sequence recurrence in ONE grid-free invocation
# ----------------------------------------------------------------------------
def lmu_kernel(x_ref, wx_ref, wrec_ref, fcw_ref, fcb_ref,
               seq_out_ref, state_h_ref, m_out_ref):
    B, S, _ = x_ref.shape
    H = seq_out_ref.shape[2]
    M = m_out_ref.shape[1]
    HM = H + M

    w_x = wx_ref[...]                      # (I,   H+M)
    w_rec = wrec_ref[...]                  # (H+M, H+M)
    x_all = x_ref[...]                     # (B, S, I)

    # Hoisted x-path: S independent matmuls with no dependence on the carry;
    # the scheduler pipelines them ahead of / under the serial recurrence.
    xc = [jnp.dot(x_all[:, t, :], w_x, preferred_element_type=jnp.float32)
          for t in range(S)]               # S x (B, H+M)

    # Lanes [0, H) of the carry are the hidden part (tanh); [H, H+M) memory.
    is_h = jax.lax.broadcasted_iota(jnp.int32, (B, HM), 1) < H

    carry = jnp.zeros((B, HM), jnp.float32)
    for t in range(S):                     # S == 8: full static unroll
        z = jnp.dot(carry, w_rec, preferred_element_type=jnp.float32) + xc[t]
        carry = jnp.where(is_h, jnp.tanh(z), z)
        seq_out_ref[:, t, :] = carry[:, :H]        # h occupies lanes 0..H-1

    h_fin = carry[:, :H]                   # (B, H)
    m_out_ref[...] = carry[:, H:]          # (B, M)

    # Final fc + per-column clamping (col 2 -> [0,1], others -> [-1,1]).
    ht = (jnp.dot(h_fin, fcw_ref[...], preferred_element_type=jnp.float32)
          + fcb_ref[...])                  # (B, O)
    col = jax.lax.broadcasted_iota(jnp.int32, ht.shape, 1)
    state_h_ref[...] = jnp.where(col == 2,
                                 jnp.clip(ht, 0.0, 1.0),
                                 jnp.clip(ht, -1.0, 1.0))


@jax.jit
def lmu_policy_forward(x, folded):
    """x: [batch, seq, input_size] f32. Returns (output, (state_h, m_final))."""
    w_x, w_rec, fc_wT, fc_b = folded
    B, S, _ = x.shape
    HM = w_rec.shape[0]
    H = fc_wT.shape[0]
    M = HM - H
    O = fc_wT.shape[1]                     # derived from fc weights, not fixed

    vmem = pl.BlockSpec(memory_space=pltpu.MemorySpace.VMEM)

    seq_out, state_h, m_final = pl.pallas_call(
        lmu_kernel,
        out_shape=(jax.ShapeDtypeStruct((B, S, H), jnp.float32),   # hiddens
                   jax.ShapeDtypeStruct((B, O), jnp.float32),      # clamped fc
                   jax.ShapeDtypeStruct((B, M), jnp.float32)),     # final mem
        in_specs=[vmem] * 5,
        out_specs=(vmem, vmem, vmem),
    )(x, w_x, w_rec, fc_wT, fc_b)

    return seq_out, (state_h, m_final)     # no wrapper transposes / slices


# ----------------------------------------------------------------------------
# Pure-JAX reference (mirrors the PyTorch forward) for validation
# ----------------------------------------------------------------------------
def lmu_policy_reference(x, params):
    Bsz, S, _ = x.shape
    H = params["W_h"].shape[0]
    M = params["A"].shape[0]
    h = jnp.zeros((Bsz, H), jnp.float32)
    m = jnp.zeros((Bsz, M), jnp.float32)
    outs = []
    for t in range(S):
        xt = x[:, t, :]
        u = xt @ params["e_x"].T + h @ params["e_h"].T + m @ params["e_m"].T
        m = m @ params["A"].T + u @ params["B"].T
        h = jnp.tanh(xt @ params["W_x"].T + h @ params["W_h"].T
                     + m @ params["W_m"].T)
        outs.append(h)
    output = jnp.stack(outs, axis=1)
    ht = h @ params["fc_w"].T + params["fc_b"]
    dt3 = jnp.clip(ht[:, 0:1], -1.0, 1.0)
    dt4 = jnp.clip(ht[:, 1:2], -1.0, 1.0)
    dl = jnp.clip(ht[:, 2:3], 0.0, 1.0)
    db = jnp.clip(ht[:, 3:4], -1.0, 1.0)
    dr = jnp.clip(ht[:, 4:5], -1.0, 1.0)
    state_h = jnp.concatenate([dt3, dt4, dl, db, dr], axis=1)
    return output, (state_h, m)


if __name__ == "__main__":
    # 7 input states (x y z q1..q4), hidden=32, memory=16, theta=8,
    # 5 policy outputs; batch=2, seq=8.
    input_size, hidden_size, memory_size, theta, output_size = 7, 32, 16, 8, 5
    batch_size, seq_len = 2, 8

    key = jax.random.PRNGKey(0)
    k_param, k_x = jax.random.split(key)
    params = init_params(k_param, input_size, hidden_size, memory_size,
                         theta, output_size)
    folded = fold_params(params)     # one-time host-side folding
    x = jax.random.normal(k_x, (batch_size, seq_len, input_size), jnp.float32)

    out, (state_h, m_final) = lmu_policy_forward(x, folded)
    jax.block_until_ready((out, state_h, m_final))

    ref_out, (ref_state_h, ref_m) = lmu_policy_reference(x, params)
    np.testing.assert_allclose(np.asarray(out), np.asarray(ref_out),
                               rtol=1e-4, atol=1e-4)
    np.testing.assert_allclose(np.asarray(state_h), np.asarray(ref_state_h),
                               rtol=1e-4, atol=1e-4)
    np.testing.assert_allclose(np.asarray(m_final), np.asarray(ref_m),
                               rtol=1e-4, atol=1e-4)

    print("KERNEL_OK")
</pallas_src>

<mosaic_0001>
module attributes {stable_mosaic.version = 11 : i64} {
  func.func @lmu_kernel(%arg0: memref<2x8x7xf32, #tpu.memory_space<vmem>>, %arg1: memref<7x48xf32, #tpu.memory_space<vmem>>, %arg2: memref<48x48xf32, #tpu.memory_space<vmem>>, %arg3: memref<32x5xf32, #tpu.memory_space<vmem>>, %arg4: memref<1x5xf32, #tpu.memory_space<vmem>>, %arg5: memref<2x8x32xf32, #tpu.memory_space<vmem>>, %arg6: memref<2x5xf32, #tpu.memory_space<vmem>>, %arg7: memref<2x16xf32, #tpu.memory_space<vmem>>) attributes {dimension_semantics = [], scalar_prefetch = 0 : i64, scratch_operands = 0 : i64, tpu.core_type = #tpu.core_type<tc>} {
    %c0 = arith.constant 0 : index
    %c0_0 = arith.constant 0 : index
    %0 = vector.load %arg1[%c0, %c0_0] : memref<7x48xf32, #tpu.memory_space<vmem>>, vector<7x48xf32>
    %c0_1 = arith.constant 0 : index
    %c0_2 = arith.constant 0 : index
    %1 = vector.load %arg2[%c0_1, %c0_2] : memref<48x48xf32, #tpu.memory_space<vmem>>, vector<48x48xf32>
    %c0_3 = arith.constant 0 : index
    %c0_4 = arith.constant 0 : index
    %c0_5 = arith.constant 0 : index
    %2 = vector.load %arg0[%c0_3, %c0_4, %c0_5] : memref<2x8x7xf32, #tpu.memory_space<vmem>>, vector<2x8x7xf32>
    %3 = vector.extract_strided_slice %2 {offsets = [0, 0, 0], sizes = [2, 1, 7], strides = [1, 1, 1]} : vector<2x8x7xf32> to vector<2x1x7xf32>
    %4 = vector.shape_cast %3 : vector<2x1x7xf32> to vector<2x7xf32>
    %cst = arith.constant dense<0.000000e+00> : vector<2x48xf32>
    %5 = tpu.matmul %4, %0, %cst {dimension_numbers = #tpu.dot_dimension_numbers<[1], [0], [0], [1], [0, 0, 1, 1], [], []>} : vector<2x7xf32>, vector<7x48xf32>, vector<2x48xf32> -> vector<2x48xf32>
    %6 = vector.extract_strided_slice %2 {offsets = [0, 1, 0], sizes = [2, 1, 7], strides = [1, 1, 1]} : vector<2x8x7xf32> to vector<2x1x7xf32>
    %7 = vector.shape_cast %6 : vector<2x1x7xf32> to vector<2x7xf32>
    %cst_6 = arith.constant dense<0.000000e+00> : vector<2x48xf32>
    %8 = tpu.matmul %7, %0, %cst_6 {dimension_numbers = #tpu.dot_dimension_numbers<[1], [0], [0], [1], [0, 0, 1, 1], [], []>} : vector<2x7xf32>, vector<7x48xf32>, vector<2x48xf32> -> vector<2x48xf32>
    %9 = vector.extract_strided_slice %2 {offsets = [0, 2, 0], sizes = [2, 1, 7], strides = [1, 1, 1]} : vector<2x8x7xf32> to vector<2x1x7xf32>
    %10 = vector.shape_cast %9 : vector<2x1x7xf32> to vector<2x7xf32>
    %cst_7 = arith.constant dense<0.000000e+00> : vector<2x48xf32>
    %11 = tpu.matmul %10, %0, %cst_7 {dimension_numbers = #tpu.dot_dimension_numbers<[1], [0], [0], [1], [0, 0, 1, 1], [], []>} : vector<2x7xf32>, vector<7x48xf32>, vector<2x48xf32> -> vector<2x48xf32>
    %12 = vector.extract_strided_slice %2 {offsets = [0, 3, 0], sizes = [2, 1, 7], strides = [1, 1, 1]} : vector<2x8x7xf32> to vector<2x1x7xf32>
    %13 = vector.shape_cast %12 : vector<2x1x7xf32> to vector<2x7xf32>
    %cst_8 = arith.constant dense<0.000000e+00> : vector<2x48xf32>
    %14 = tpu.matmul %13, %0, %cst_8 {dimension_numbers = #tpu.dot_dimension_numbers<[1], [0], [0], [1], [0, 0, 1, 1], [], []>} : vector<2x7xf32>, vector<7x48xf32>, vector<2x48xf32> -> vector<2x48xf32>
    %15 = vector.extract_strided_slice %2 {offsets = [0, 4, 0], sizes = [2, 1, 7], strides = [1, 1, 1]} : vector<2x8x7xf32> to vector<2x1x7xf32>
    %16 = vector.shape_cast %15 : vector<2x1x7xf32> to vector<2x7xf32>
    %cst_9 = arith.constant dense<0.000000e+00> : vector<2x48xf32>
    %17 = tpu.matmul %16, %0, %cst_9 {dimension_numbers = #tpu.dot_dimension_numbers<[1], [0], [0], [1], [0, 0, 1, 1], [], []>} : vector<2x7xf32>, vector<7x48xf32>, vector<2x48xf32> -> vector<2x48xf32>
    %18 = vector.extract_strided_slice %2 {offsets = [0, 5, 0], sizes = [2, 1, 7], strides = [1, 1, 1]} : vector<2x8x7xf32> to vector<2x1x7xf32>
    %19 = vector.shape_cast %18 : vector<2x1x7xf32> to vector<2x7xf32>
    %cst_10 = arith.constant dense<0.000000e+00> : vector<2x48xf32>
    %20 = tpu.matmul %19, %0, %cst_10 {dimension_numbers = #tpu.dot_dimension_numbers<[1], [0], [0], [1], [0, 0, 1, 1], [], []>} : vector<2x7xf32>, vector<7x48xf32>, vector<2x48xf32> -> vector<2x48xf32>
    %21 = vector.extract_strided_slice %2 {offsets = [0, 6, 0], sizes = [2, 1, 7], strides = [1, 1, 1]} : vector<2x8x7xf32> to vector<2x1x7xf32>
    %22 = vector.shape_cast %21 : vector<2x1x7xf32> to vector<2x7xf32>
    %cst_11 = arith.constant dense<0.000000e+00> : vector<2x48xf32>
    %23 = tpu.matmul %22, %0, %cst_11 {dimension_numbers = #tpu.dot_dimension_numbers<[1], [0], [0], [1], [0, 0, 1, 1], [], []>} : vector<2x7xf32>, vector<7x48xf32>, vector<2x48xf32> -> vector<2x48xf32>
    %24 = vector.extract_strided_slice %2 {offsets = [0, 7, 0], sizes = [2, 1, 7], strides = [1, 1, 1]} : vector<2x8x7xf32> to vector<2x1x7xf32>
    %25 = vector.shape_cast %24 : vector<2x1x7xf32> to vector<2x7xf32>
    %cst_12 = arith.constant dense<0.000000e+00> : vector<2x48xf32>
    %26 = tpu.matmul %25, %0, %cst_12 {dimension_numbers = #tpu.dot_dimension_numbers<[1], [0], [0], [1], [0, 0, 1, 1], [], []>} : vector<2x7xf32>, vector<7x48xf32>, vector<2x48xf32> -> vector<2x48xf32>
    %27 = tpu.iota {dimensions = array<i32: 1>} : vector<2x48xi32>
    %c32_i32 = arith.constant 32 : i32
    %28 = vector.broadcast %c32_i32 : i32 to vector<2x48xi32>
    %29 = arith.cmpi slt, %27, %28 : vector<2x48xi32>
    %cst_13 = arith.constant 0.000000e+00 : f32
    %30 = vector.broadcast %cst_13 : f32 to vector<2x48xf32>
    %cst_14 = arith.constant dense<0.000000e+00> : vector<2x48xf32>
    %31 = tpu.matmul %30, %1, %cst_14 {dimension_numbers = #tpu.dot_dimension_numbers<[1], [0], [0], [1], [0, 0, 1, 1], [], []>} : vector<2x48xf32>, vector<48x48xf32>, vector<2x48xf32> -> vector<2x48xf32>
    %32 = arith.addf %31, %5 : vector<2x48xf32>
    %33 = math.tanh %32 : vector<2x48xf32>
    %34 = arith.select %29, %33, %32 : vector<2x48xi1>, vector<2x48xf32>
    %35 = vector.extract_strided_slice %34 {offsets = [0, 0], sizes = [2, 32], strides = [1, 1]} : vector<2x48xf32> to vector<2x32xf32>
    %c0_15 = arith.constant 0 : index
    %c0_16 = arith.constant 0 : index
    %c0_17 = arith.constant 0 : index
    %36 = vector.load %arg5[%c0_15, %c0_16, %c0_17] : memref<2x8x32xf32, #tpu.memory_space<vmem>>, vector<2x1x32xf32>
    %37 = vector.shape_cast %36 : vector<2x1x32xf32> to vector<2x32xf32>
    %38 = vector.shape_cast %35 : vector<2x32xf32> to vector<2x1x32xf32>
    tpu.vector_store %arg5[%c0_15, %c0_16, %c0_17], %38 {strides = array<i32>} : memref<2x8x32xf32, #tpu.memory_space<vmem>>, vector<2x1x32xf32>,
    %cst_18 = arith.constant dense<0.000000e+00> : vector<2x48xf32>
    %39 = tpu.matmul %34, %1, %cst_18 {dimension_numbers = #tpu.dot_dimension_numbers<[1], [0], [0], [1], [0, 0, 1, 1], [], []>} : vector<2x48xf32>, vector<48x48xf32>, vector<2x48xf32> -> vector<2x48xf32>
    %40 = arith.addf %39, %8 : vector<2x48xf32>
    %41 = math.tanh %40 : vector<2x48xf32>
    %42 = arith.select %29, %41, %40 : vector<2x48xi1>, vector<2x48xf32>
    %43 = vector.extract_strided_slice %42 {offsets = [0, 0], sizes = [2, 32], strides = [1, 1]} : vector<2x48xf32> to vector<2x32xf32>
    %c0_19 = arith.constant 0 : index
    %c1 = arith.constant 1 : index
    %c0_20 = arith.constant 0 : index
    %44 = vector.load %arg5[%c0_19, %c1, %c0_20] : memref<2x8x32xf32, #tpu.memory_space<vmem>>, vector<2x1x32xf32>
    %45 = vector.shape_cast %44 : vector<2x1x32xf32> to vector<2x32xf32>
    %46 = vector.shape_cast %43 : vector<2x32xf32> to vector<2x1x32xf32>
    tpu.vector_store %arg5[%c0_19, %c1, %c0_20], %46 {strides = array<i32>} : memref<2x8x32xf32, #tpu.memory_space<vmem>>, vector<2x1x32xf32>,
    %cst_21 = arith.constant dense<0.000000e+00> : vector<2x48xf32>
    %47 = tpu.matmul %42, %1, %cst_21 {dimension_numbers = #tpu.dot_dimension_numbers<[1], [0], [0], [1], [0, 0, 1, 1], [], []>} : vector<2x48xf32>, vector<48x48xf32>, vector<2x48xf32> -> vector<2x48xf32>
    %48 = arith.addf %47, %11 : vector<2x48xf32>
    %49 = math.tanh %48 : vector<2x48xf32>
    %50 = arith.select %29, %49, %48 : vector<2x48xi1>, vector<2x48xf32>
    %51 = vector.extract_strided_slice %50 {offsets = [0, 0], sizes = [2, 32], strides = [1, 1]} : vector<2x48xf32> to vector<2x32xf32>
    %c0_22 = arith.constant 0 : index
    %c2 = arith.constant 2 : index
    %c0_23 = arith.constant 0 : index
    %52 = vector.load %arg5[%c0_22, %c2, %c0_23] : memref<2x8x32xf32, #tpu.memory_space<vmem>>, vector<2x1x32xf32>
    %53 = vector.shape_cast %52 : vector<2x1x32xf32> to vector<2x32xf32>
    %54 = vector.shape_cast %51 : vector<2x32xf32> to vector<2x1x32xf32>
    tpu.vector_store %arg5[%c0_22, %c2, %c0_23], %54 {strides = array<i32>} : memref<2x8x32xf32, #tpu.memory_space<vmem>>, vector<2x1x32xf32>,
    %cst_24 = arith.constant dense<0.000000e+00> : vector<2x48xf32>
    %55 = tpu.matmul %50, %1, %cst_24 {dimension_numbers = #tpu.dot_dimension_numbers<[1], [0], [0], [1], [0, 0, 1, 1], [], []>} : vector<2x48xf32>, vector<48x48xf32>, vector<2x48xf32> -> vector<2x48xf32>
    %56 = arith.addf %55, %14 : vector<2x48xf32>
    %57 = math.tanh %56 : vector<2x48xf32>
    %58 = arith.select %29, %57, %56 : vector<2x48xi1>, vector<2x48xf32>
    %59 = vector.extract_strided_slice %58 {offsets = [0, 0], sizes = [2, 32], strides = [1, 1]} : vector<2x48xf32> to vector<2x32xf32>
    %c0_25 = arith.constant 0 : index
    %c3 = arith.constant 3 : index
    %c0_26 = arith.constant 0 : index
    %60 = vector.load %arg5[%c0_25, %c3, %c0_26] : memref<2x8x32xf32, #tpu.memory_space<vmem>>, vector<2x1x32xf32>
    %61 = vector.shape_cast %60 : vector<2x1x32xf32> to vector<2x32xf32>
    %62 = vector.shape_cast %59 : vector<2x32xf32> to vector<2x1x32xf32>
    tpu.vector_store %arg5[%c0_25, %c3, %c0_26], %62 {strides = array<i32>} : memref<2x8x32xf32, #tpu.memory_space<vmem>>, vector<2x1x32xf32>,
    %cst_27 = arith.constant dense<0.000000e+00> : vector<2x48xf32>
    %63 = tpu.matmul %58, %1, %cst_27 {dimension_numbers = #tpu.dot_dimension_numbers<[1], [0], [0], [1], [0, 0, 1, 1], [], []>} : vector<2x48xf32>, vector<48x48xf32>, vector<2x48xf32> -> vector<2x48xf32>
    %64 = arith.addf %63, %17 : vector<2x48xf32>
    %65 = math.tanh %64 : vector<2x48xf32>
    %66 = arith.select %29, %65, %64 : vector<2x48xi1>, vector<2x48xf32>
    %67 = vector.extract_strided_slice %66 {offsets = [0, 0], sizes = [2, 32], strides = [1, 1]} : vector<2x48xf32> to vector<2x32xf32>
    %c0_28 = arith.constant 0 : index
    %c4 = arith.constant 4 : index
    %c0_29 = arith.constant 0 : index
    %68 = vector.load %arg5[%c0_28, %c4, %c0_29] : memref<2x8x32xf32, #tpu.memory_space<vmem>>, vector<2x1x32xf32>
    %69 = vector.shape_cast %68 : vector<2x1x32xf32> to vector<2x32xf32>
    %70 = vector.shape_cast %67 : vector<2x32xf32> to vector<2x1x32xf32>
    tpu.vector_store %arg5[%c0_28, %c4, %c0_29], %70 {strides = array<i32>} : memref<2x8x32xf32, #tpu.memory_space<vmem>>, vector<2x1x32xf32>,
    %cst_30 = arith.constant dense<0.000000e+00> : vector<2x48xf32>
    %71 = tpu.matmul %66, %1, %cst_30 {dimension_numbers = #tpu.dot_dimension_numbers<[1], [0], [0], [1], [0, 0, 1, 1], [], []>} : vector<2x48xf32>, vector<48x48xf32>, vector<2x48xf32> -> vector<2x48xf32>
    %72 = arith.addf %71, %20 : vector<2x48xf32>
    %73 = math.tanh %72 : vector<2x48xf32>
    %74 = arith.select %29, %73, %72 : vector<2x48xi1>, vector<2x48xf32>
    %75 = vector.extract_strided_slice %74 {offsets = [0, 0], sizes = [2, 32], strides = [1, 1]} : vector<2x48xf32> to vector<2x32xf32>
    %c0_31 = arith.constant 0 : index
    %c5 = arith.constant 5 : index
    %c0_32 = arith.constant 0 : index
    %76 = vector.load %arg5[%c0_31, %c5, %c0_32] : memref<2x8x32xf32, #tpu.memory_space<vmem>>, vector<2x1x32xf32>
    %77 = vector.shape_cast %76 : vector<2x1x32xf32> to vector<2x32xf32>
    %78 = vector.shape_cast %75 : vector<2x32xf32> to vector<2x1x32xf32>
    tpu.vector_store %arg5[%c0_31, %c5, %c0_32], %78 {strides = array<i32>} : memref<2x8x32xf32, #tpu.memory_space<vmem>>, vector<2x1x32xf32>,
    %cst_33 = arith.constant dense<0.000000e+00> : vector<2x48xf32>
    %79 = tpu.matmul %74, %1, %cst_33 {dimension_numbers = #tpu.dot_dimension_numbers<[1], [0], [0], [1], [0, 0, 1, 1], [], []>} : vector<2x48xf32>, vector<48x48xf32>, vector<2x48xf32> -> vector<2x48xf32>
    %80 = arith.addf %79, %23 : vector<2x48xf32>
    %81 = math.tanh %80 : vector<2x48xf32>
    %82 = arith.select %29, %81, %80 : vector<2x48xi1>, vector<2x48xf32>
    %83 = vector.extract_strided_slice %82 {offsets = [0, 0], sizes = [2, 32], strides = [1, 1]} : vector<2x48xf32> to vector<2x32xf32>
    %c0_34 = arith.constant 0 : index
    %c6 = arith.constant 6 : index
    %c0_35 = arith.constant 0 : index
    %84 = vector.load %arg5[%c0_34, %c6, %c0_35] : memref<2x8x32xf32, #tpu.memory_space<vmem>>, vector<2x1x32xf32>
    %85 = vector.shape_cast %84 : vector<2x1x32xf32> to vector<2x32xf32>
    %86 = vector.shape_cast %83 : vector<2x32xf32> to vector<2x1x32xf32>
    tpu.vector_store %arg5[%c0_34, %c6, %c0_35], %86 {strides = array<i32>} : memref<2x8x32xf32, #tpu.memory_space<vmem>>, vector<2x1x32xf32>,
    %cst_36 = arith.constant dense<0.000000e+00> : vector<2x48xf32>
    %87 = tpu.matmul %82, %1, %cst_36 {dimension_numbers = #tpu.dot_dimension_numbers<[1], [0], [0], [1], [0, 0, 1, 1], [], []>} : vector<2x48xf32>, vector<48x48xf32>, vector<2x48xf32> -> vector<2x48xf32>
    %88 = arith.addf %87, %26 : vector<2x48xf32>
    %89 = math.tanh %88 : vector<2x48xf32>
    %90 = arith.select %29, %89, %88 : vector<2x48xi1>, vector<2x48xf32>
    %91 = vector.extract_strided_slice %90 {offsets = [0, 0], sizes = [2, 32], strides = [1, 1]} : vector<2x48xf32> to vector<2x32xf32>
    %c0_37 = arith.constant 0 : index
    %c7 = arith.constant 7 : index
    %c0_38 = arith.constant 0 : index
    %92 = vector.load %arg5[%c0_37, %c7, %c0_38] : memref<2x8x32xf32, #tpu.memory_space<vmem>>, vector<2x1x32xf32>
    %93 = vector.shape_cast %92 : vector<2x1x32xf32> to vector<2x32xf32>
    %94 = vector.shape_cast %91 : vector<2x32xf32> to vector<2x1x32xf32>
    tpu.vector_store %arg5[%c0_37, %c7, %c0_38], %94 {strides = array<i32>} : memref<2x8x32xf32, #tpu.memory_space<vmem>>, vector<2x1x32xf32>,
    %95 = vector.extract_strided_slice %90 {offsets = [0, 0], sizes = [2, 32], strides = [1, 1]} : vector<2x48xf32> to vector<2x32xf32>
    %96 = vector.extract_strided_slice %90 {offsets = [0, 32], sizes = [2, 16], strides = [1, 1]} : vector<2x48xf32> to vector<2x16xf32>
    %c0_39 = arith.constant 0 : index
    %c0_40 = arith.constant 0 : index
    %97 = vector.load %arg7[%c0_39, %c0_40] : memref<2x16xf32, #tpu.memory_space<vmem>>, vector<2x16xf32>
    tpu.vector_store %arg7[%c0_39, %c0_40], %96 {strides = array<i32>} : memref<2x16xf32, #tpu.memory_space<vmem>>, vector<2x16xf32>,
    %c0_41 = arith.constant 0 : index
    %c0_42 = arith.constant 0 : index
    %98 = vector.load %arg3[%c0_41, %c0_42] : memref<32x5xf32, #tpu.memory_space<vmem>>, vector<32x5xf32>
    %cst_43 = arith.constant dense<0.000000e+00> : vector<2x5xf32>
    %99 = tpu.matmul %95, %98, %cst_43 {dimension_numbers = #tpu.dot_dimension_numbers<[1], [0], [0], [1], [0, 0, 1, 1], [], []>} : vector<2x32xf32>, vector<32x5xf32>, vector<2x5xf32> -> vector<2x5xf32>
    %c0_44 = arith.constant 0 : index
    %c0_45 = arith.constant 0 : index
    %100 = vector.load %arg4[%c0_44, %c0_45] : memref<1x5xf32, #tpu.memory_space<vmem>>, vector<1x5xf32>
    %101 = vector.broadcast %100 : vector<1x5xf32> to vector<2x5xf32>
    %102 = arith.addf %99, %101 : vector<2x5xf32>
    %103 = tpu.iota {dimensions = array<i32: 1>} : vector<2x5xi32>
    %c2_i32 = arith.constant 2 : i32
    %104 = vector.broadcast %c2_i32 : i32 to vector<2x5xi32>
    %105 = arith.cmpi eq, %103, %104 : vector<2x5xi32>
    %cst_46 = arith.constant 0.000000e+00 : f32
    %cst_47 = arith.constant 1.000000e+00 : f32
    %106 = vector.broadcast %cst_46 : f32 to vector<2x5xf32>
    %107 = arith.maximumf %106, %102 : vector<2x5xf32>
    %108 = vector.broadcast %cst_47 : f32 to vector<2x5xf32>
    %109 = arith.minimumf %108, %107 : vector<2x5xf32>
    %cst_48 = arith.constant -1.000000e+00 : f32
    %cst_49 = arith.constant 1.000000e+00 : f32
    %110 = vector.broadcast %cst_48 : f32 to vector<2x5xf32>
    %111 = arith.maximumf %110, %102 : vector<2x5xf32>
    %112 = vector.broadcast %cst_49 : f32 to vector<2x5xf32>
    %113 = arith.minimumf %112, %111 : vector<2x5xf32>
    %114 = arith.select %105, %109, %113 : vector<2x5xi1>, vector<2x5xf32>
    %c0_50 = arith.constant 0 : index
    %c0_51 = arith.constant 0 : index
    %115 = vector.load %arg6[%c0_50, %c0_51] : memref<2x5xf32, #tpu.memory_space<vmem>>, vector<2x5xf32>
    tpu.vector_store %arg6[%c0_50, %c0_51], %114 {strides = array<i32>} : memref<2x5xf32, #tpu.memory_space<vmem>>, vector<2x5xf32>,
    return
  }
}

</mosaic_0001>

<llo_original>
// kernel: lmu_policy_forward.1
$region0: #{lmu_policy_forward.1}
  #allocation0 [shape = 'u32[]', space=smem, size = 0x4, offset = 0x4, fixed_abs, tag = 'smem constant byte address 0x4 - core index']
  #allocation1 [shape = 'u32[144,128]{1,0:T(1,128)}', space=vmem, size = 0x12000, scoped, tag = 'internal scratch']
  %s0 = inlined_call_operand.vmem [shape: f32[2,8,7], index: 0, kind: input, shape index: {}]
  %s1 = inlined_call_operand.vmem [shape: f32[7,48], index: 1, kind: input, shape index: {}]
  %s2 = inlined_call_operand.vmem [shape: f32[48,48], index: 2, kind: input, shape index: {}]
  %s3 = inlined_call_operand.vmem [shape: f32[32,5], index: 3, kind: input, shape index: {}]
  %s4 = inlined_call_operand.vmem [shape: f32[1,5], index: 4, kind: input, shape index: {}]
  %s5 = inlined_call_operand.hbm [shape: f32[2,8,32], index: 5, kind: output, shape index: {0}]
  %s6 = inlined_call_operand.hbm [shape: f32[2,5], index: 6, kind: output, shape index: {1}]
  %s7 = inlined_call_operand.hbm [shape: f32[2,16], index: 7, kind: output, shape index: {2}]
  %8 = xla_tuple %s5, %s6, %s7
  %s9 = sld [smem:[#allocation0]]
  $region46: #{lmu_policy_forward.1} parent=0
    _
  %s11 = ssub.s32 1, %s9
  %s12 = scalar_select 0, %s11, %s9
  $region1: #{lmu_policy_forward.1} parent=0
    #allocation2 [shape = 'u8[8192]{0}', space=vmem, size = 0x2000, scoped, tag = 'output window, operand 0, single buffered']
    #allocation3 [shape = 's32[1]{0}', space=sflag, size = 0x4, scoped, tag = 'scoped memory for lmu_policy_forward.1']
    #allocation4 [shape = 'u8[1024]{0}', space=vmem, size = 0x400, scoped, tag = 'output window, operand 1, single buffered']
    #allocation5 [shape = 's32[1]{0}', space=sflag, size = 0x4, scoped, tag = 'scoped memory for lmu_policy_forward.1']
    #allocation6 [shape = 'u8[1024]{0}', space=vmem, size = 0x400, scoped, tag = 'output window, operand 2, single buffered']
    %13 = vsyncpa [#allocation3], 0
    %14 = vsyncpa [#allocation5], 0
    // Predicated region
    $region2: #{lmu_policy_forward.1} parent=1 // pred_check
      _
    $region3: #{lmu_policy_forward.1} parent=1 // pred_check_branch
      %16 = sbr.rel (0) target = $region5
    $region4: #{lmu_policy_forward.1} parent=1 // pred_region
      _
    $region5: #{lmu_policy_forward.1} parent=1 // pred_fallthru
      _
    // Predicated region
    $region6: #{lmu_policy_forward.1} parent=1 // pred_check
      _
    $region7: #{lmu_policy_forward.1} parent=1 // pred_check_branch
      %18 = sbr.rel (0) target = $region9
    $region8: #{lmu_policy_forward.1} parent=1 // pred_region
      _
    $region9: #{lmu_policy_forward.1} parent=1 // pred_fallthru
      _
    // Predicated region
    $region10: #{lmu_policy_forward.1} parent=1 // pred_check
      _
    $region11: #{lmu_policy_forward.1} parent=1 // pred_check_branch
      %20 = sbr.rel (0) target = $region13
    $region12: #{lmu_policy_forward.1} parent=1 // pred_region
      _
    $region13: #{lmu_policy_forward.1} parent=1 // pred_fallthru
      _
    // Predicated region
    $region14: #{lmu_policy_forward.1} parent=1 // pred_check
      _
    $region15: #{lmu_policy_forward.1} parent=1 // pred_check_branch
      %22 = sbr.rel (0) target = $region17
    $region16: #{lmu_policy_forward.1} parent=1 // pred_region
      _
    $region17: #{lmu_policy_forward.1} parent=1 // pred_fallthru
      _
    // Predicated region
    $region18: #{lmu_policy_forward.1} parent=1 // pred_check
      _
    $region19: #{lmu_policy_forward.1} parent=1 // pred_check_branch
      %24 = sbr.rel (0) target = $region21
    $region20: #{lmu_policy_forward.1} parent=1 // pred_region
      _
    $region21: #{lmu_policy_forward.1} parent=1 // pred_fallthru
      _
    %v25 = vld [vmem:[%s1] sm:$0x7f]
    %v26 = vld [vmem:[%s2] sm:$0xff]
    %v27 = vld [vmem:[%s2 + $0x8] sm:$0xff]
    %v28 = vld [vmem:[%s2 + $0x10] sm:$0xff]
    %v29 = vld [vmem:[%s2 + $0x18] sm:$0xff]
    %v30 = vld [vmem:[%s2 + $0x20] sm:$0xff]
    %v31 = vld [vmem:[%s2 + $0x28] sm:$0xff]
    %v32 = vld [vmem:[%s0] sm:$0xff]
    %v33 = vld [vmem:[%s0 + $0x8] sm:$0xff]
    %v36 = vrot.slane %v33, 7
    %vm37 = vcmask 1041409
    %v38 = vsel %vm37, %v36, %v32
    %vm39 = vcmask 56320
    %v40 = vsel %vm39, %v38, 0
    %vm42 = vcmask 1046528
    %v44 = vsel %vm42, %v25, 0
    %46 = vmatprep.subr.mxu0 0.0
    %47 = vmatpush1.msra.mxu0 %v44
    %48 = vmatprep.subr.mxu0 0.0
    %49 = vmatpush1.msra.mxu0 0.0
    %50 = vmatprep.subr.mxu0 0.0
    %51 = vmatpush1.msra.mxu0 0.0
    %52 = vmatprep.subr.mxu0 0.0
    %53 = vmatpush1.msra.mxu0 0.0
    %54 = vmatprep.subr.mxu0 0.0
    %55 = vmatpush1.msra.mxu0 0.0
    %56 = vmatprep.subr.mxu0 0.0
    %57 = vmatpush1.msra.mxu0 0.0
    %58 = vmatprep.subr.mxu0 0.0
    %59 = vmatpush1.msra.mxu0 0.0
    %60 = vmatprep.subr.mxu0 0.0
    %61 = vmatpush1.msra.mxu0 0.0
    %62 = vmatprep.subr.mxu0 0.0
    %63 = vmatpush1.msra.mxu0 0.0
    %64 = vmatprep.subr.mxu0 0.0
    %65 = vmatpush1.msra.mxu0 0.0
    %66 = vmatprep.subr.mxu0 0.0
    %67 = vmatpush1.msra.mxu0 0.0
    %68 = vmatprep.subr.mxu0 0.0
    %69 = vmatpush1.msra.mxu0 0.0
    %70 = vmatprep.subr.mxu0 0.0
    %71 = vmatpush1.msra.mxu0 0.0
    %72 = vmatprep.subr.mxu0 0.0
    %73 = vmatpush1.msra.mxu0 0.0
    %74 = vmatprep.subr.mxu0 0.0
    %75 = vmatpush1.msra.mxu0 0.0
    %76 = vmatprep.subr.mxu0 0.0
    %77 = vmatpush1.msra.mxu0 0.0
    %78 = vmatprep.subr.mxu0 0.0
    %79 = vmatpush1.msra.mxu0 0.0
    %80 = vmatprep.subr.mxu0 0.0
    %81 = vmatpush1.msra.mxu0 0.0
    %82 = vmatprep.subr.mxu0 0.0
    %83 = vmatpush1.msra.mxu0 0.0
    %84 = vmatprep.subr.mxu0 0.0
    %85 = vmatpush1.msra.mxu0 0.0
    %86 = vmatprep.subr.mxu0 0.0
    %87 = vmatpush1.msra.mxu0 0.0
    %88 = vmatprep.subr.mxu0 0.0
    %89 = vmatpush1.msra.mxu0 0.0
    %90 = vmatprep.subr.mxu0 0.0
    %91 = vmatpush1.msra.mxu0 0.0
    %92 = vmatprep.subr.mxu0 0.0
    %93 = vmatpush1.msra.mxu0 0.0
    %94 = vmatprep.subr.mxu0 0.0
    %95 = vmatpush1.msra.mxu0 0.0
    %96 = vmatprep.subr.mxu0 0.0
    %97 = vmatpush1.msra.mxu0 0.0
    %98 = vmatprep.subr.mxu0 0.0
    %99 = vmatpush1.msra.mxu0 0.0
    %100 = vmatprep.subr.mxu0 0.0
    %101 = vmatpush1.msra.mxu0 0.0
    %102 = vmatprep.subr.mxu0 0.0
    %103 = vmatpush1.msra.mxu0 0.0
    %104 = vmatprep.subr.mxu0 0.0
    %105 = vmatpush1.msra.mxu0 0.0
    %106 = vmatprep.subr.mxu0 0.0
    %107 = vmatpush1.msra.mxu0 0.0
    %108 = vmatprep.subr.mxu0 0.0
    %109 = vmatpush1.msra.mxu0 0.0
    %110 = vmatprep.mubr.f32.mxu0 0.0
    %111 = vmatmul.mubr.f32.gmra.mrb[0].mxu0 %v40
    %v112 = vpop.f32.mrb[0].mxu0
    %v113 = vadd.f32 0.0, %v112
    %v114 = vpop.f32.mrb[0].mxu0
    %115 = vdwg.mxu0
    %v116 = vrot.slane %v32, 1
    %v117 = vsel %vm37, %v33, %v116
    %v118 = vsel %vm39, %v117, 0
    %120 = vmatprep.subr.mxu0 0.0
    %121 = vmatpush1.msra.mxu0 %v44
    %122 = vmatprep.subr.mxu0 0.0
    %123 = vmatpush1.msra.mxu0 0.0
    %124 = vmatprep.subr.mxu0 0.0
    %125 = vmatpush1.msra.mxu0 0.0
    %126 = vmatprep.subr.mxu0 0.0
    %127 = vmatpush1.msra.mxu0 0.0
    %128 = vmatprep.subr.mxu0 0.0
    %129 = vmatpush1.msra.mxu0 0.0
    %130 = vmatprep.subr.mxu0 0.0
    %131 = vmatpush1.msra.mxu0 0.0
    %132 = vmatprep.subr.mxu0 0.0
    %133 = vmatpush1.msra.mxu0 0.0
    %134 = vmatprep.subr.mxu0 0.0
    %135 = vmatpush1.msra.mxu0 0.0
    %136 = vmatprep.subr.mxu0 0.0
    %137 = vmatpush1.msra.mxu0 0.0
    %138 = vmatprep.subr.mxu0 0.0
    %139 = vmatpush1.msra.mxu0 0.0
    %140 = vmatprep.subr.mxu0 0.0
    %141 = vmatpush1.msra.mxu0 0.0
    %142 = vmatprep.subr.mxu0 0.0
    %143 = vmatpush1.msra.mxu0 0.0
    %144 = vmatprep.subr.mxu0 0.0
    %145 = vmatpush1.msra.mxu0 0.0
    %146 = vmatprep.subr.mxu0 0.0
    %147 = vmatpush1.msra.mxu0 0.0
    %148 = vmatprep.subr.mxu0 0.0
    %149 = vmatpush1.msra.mxu0 0.0
    %150 = vmatprep.subr.mxu0 0.0
    %151 = vmatpush1.msra.mxu0 0.0
    %152 = vmatprep.subr.mxu0 0.0
    %153 = vmatpush1.msra.mxu0 0.0
    %154 = vmatprep.subr.mxu0 0.0
    %155 = vmatpush1.msra.mxu0 0.0
    %156 = vmatprep.subr.mxu0 0.0
    %157 = vmatpush1.msra.mxu0 0.0
    %158 = vmatprep.subr.mxu0 0.0
    %159 = vmatpush1.msra.mxu0 0.0
    %160 = vmatprep.subr.mxu0 0.0
    %161 = vmatpush1.msra.mxu0 0.0
    %162 = vmatprep.subr.mxu0 0.0
    %163 = vmatpush1.msra.mxu0 0.0
    %164 = vmatprep.subr.mxu0 0.0
    %165 = vmatpush1.msra.mxu0 0.0
    %166 = vmatprep.subr.mxu0 0.0
    %167 = vmatpush1.msra.mxu0 0.0
    %168 = vmatprep.subr.mxu0 0.0
    %169 = vmatpush1.msra.mxu0 0.0
    %170 = vmatprep.subr.mxu0 0.0
    %171 = vmatpush1.msra.mxu0 0.0
    %172 = vmatprep.subr.mxu0 0.0
    %173 = vmatpush1.msra.mxu0 0.0
    %174 = vmatprep.subr.mxu0 0.0
    %175 = vmatpush1.msra.mxu0 0.0
    %176 = vmatprep.subr.mxu0 0.0
    %177 = vmatpush1.msra.mxu0 0.0
    %178 = vmatprep.subr.mxu0 0.0
    %179 = vmatpush1.msra.mxu0 0.0
    %180 = vmatprep.subr.mxu0 0.0
    %181 = vmatpush1.msra.mxu0 0.0
    %182 = vmatprep.subr.mxu0 0.0
    %183 = vmatpush1.msra.mxu0 0.0
    %184 = vmatprep.mubr.f32.mxu0 0.0
    %185 = vmatmul.mubr.f32.gmra.mrb[0].mxu0 %v118
    %v186 = vpop.f32.mrb[0].mxu0
    %v187 = vadd.f32 0.0, %v186
    %v188 = vpop.f32.mrb[0].mxu0
    %189 = vdwg.mxu0
    %v190 = vrot.slane %v32, 2
    %v191 = vrot.slane %v33, 1
    %v192 = vsel %vm37, %v191, %v190
    %v193 = vsel %vm39, %v192, 0
    %195 = vmatprep.subr.mxu0 0.0
    %196 = vmatpush1.msra.mxu0 %v44
    %197 = vmatprep.subr.mxu0 0.0
    %198 = vmatpush1.msra.mxu0 0.0
    %199 = vmatprep.subr.mxu0 0.0
    %200 = vmatpush1.msra.mxu0 0.0
    %201 = vmatprep.subr.mxu0 0.0
    %202 = vmatpush1.msra.mxu0 0.0
    %203 = vmatprep.subr.mxu0 0.0
    %204 = vmatpush1.msra.mxu0 0.0
    %205 = vmatprep.subr.mxu0 0.0
    %206 = vmatpush1.msra.mxu0 0.0
    %207 = vmatprep.subr.mxu0 0.0
    %208 = vmatpush1.msra.mxu0 0.0
    %209 = vmatprep.subr.mxu0 0.0
    %210 = vmatpush1.msra.mxu0 0.0
    %211 = vmatprep.subr.mxu0 0.0
    %212 = vmatpush1.msra.mxu0 0.0
    %213 = vmatprep.subr.mxu0 0.0
    %214 = vmatpush1.msra.mxu0 0.0
    %215 = vmatprep.subr.mxu0 0.0
    %216 = vmatpush1.msra.mxu0 0.0
    %217 = vmatprep.subr.mxu0 0.0
    %218 = vmatpush1.msra.mxu0 0.0
    %219 = vmatprep.subr.mxu0 0.0
    %220 = vmatpush1.msra.mxu0 0.0
    %221 = vmatprep.subr.mxu0 0.0
    %222 = vmatpush1.msra.mxu0 0.0
    %223 = vmatprep.subr.mxu0 0.0
    %224 = vmatpush1.msra.mxu0 0.0
    %225 = vmatprep.subr.mxu0 0.0
    %226 = vmatpush1.msra.mxu0 0.0
    %227 = vmatprep.subr.mxu0 0.0
    %228 = vmatpush1.msra.mxu0 0.0
    %229 = vmatprep.subr.mxu0 0.0
    %230 = vmatpush1.msra.mxu0 0.0
    %231 = vmatprep.subr.mxu0 0.0
    %232 = vmatpush1.msra.mxu0 0.0
    %233 = vmatprep.subr.mxu0 0.0
    %234 = vmatpush1.msra.mxu0 0.0
    %235 = vmatprep.subr.mxu0 0.0
    %236 = vmatpush1.msra.mxu0 0.0
    %237 = vmatprep.subr.mxu0 0.0
    %238 = vmatpush1.msra.mxu0 0.0
    %239 = vmatprep.subr.mxu0 0.0
    %240 = vmatpush1.msra.mxu0 0.0
    %241 = vmatprep.subr.mxu0 0.0
    %242 = vmatpush1.msra.mxu0 0.0
    %243 = vmatprep.subr.mxu0 0.0
    %244 = vmatpush1.msra.mxu0 0.0
    %245 = vmatprep.subr.mxu0 0.0
    %246 = vmatpush1.msra.mxu0 0.0
    %247 = vmatprep.subr.mxu0 0.0
    %248 = vmatpush1.msra.mxu0 0.0
    %249 = vmatprep.subr.mxu0 0.0
    %250 = vmatpush1.msra.mxu0 0.0
    %251 = vmatprep.subr.mxu0 0.0
    %252 = vmatpush1.msra.mxu0 0.0
    %253 = vmatprep.subr.mxu0 0.0
    %254 = vmatpush1.msra.mxu0 0.0
    %255 = vmatprep.subr.mxu0 0.0
    %256 = vmatpush1.msra.mxu0 0.0
    %257 = vmatprep.subr.mxu0 0.0
    %258 = vmatpush1.msra.mxu0 0.0
    %259 = vmatprep.mubr.f32.mxu0 0.0
    %260 = vmatmul.mubr.f32.gmra.mrb[0].mxu0 %v193
    %v261 = vpop.f32.mrb[0].mxu0
    %v262 = vadd.f32 0.0, %v261
    %v263 = vpop.f32.mrb[0].mxu0
    %264 = vdwg.mxu0
    %v265 = vrot.slane %v32, 3
    %v266 = vrot.slane %v33, 2
    %v267 = vsel %vm37, %v266, %v265
    %v268 = vsel %vm39, %v267, 0
    %270 = vmatprep.subr.mxu0 0.0
    %271 = vmatpush1.msra.mxu0 %v44
    %272 = vmatprep.subr.mxu0 0.0
    %273 = vmatpush1.msra.mxu0 0.0
    %274 = vmatprep.subr.mxu0 0.0
    %275 = vmatpush1.msra.mxu0 0.0
    %276 = vmatprep.subr.mxu0 0.0
    %277 = vmatpush1.msra.mxu0 0.0
    %278 = vmatprep.subr.mxu0 0.0
    %279 = vmatpush1.msra.mxu0 0.0
    %280 = vmatprep.subr.mxu0 0.0
    %281 = vmatpush1.msra.mxu0 0.0
    %282 = vmatprep.subr.mxu0 0.0
    %283 = vmatpush1.msra.mxu0 0.0
    %284 = vmatprep.subr.mxu0 0.0
    %285 = vmatpush1.msra.mxu0 0.0
    %286 = vmatprep.subr.mxu0 0.0
    %287 = vmatpush1.msra.mxu0 0.0
    %288 = vmatprep.subr.mxu0 0.0
    %289 = vmatpush1.msra.mxu0 0.0
    %290 = vmatprep.subr.mxu0 0.0
    %291 = vmatpush1.msra.mxu0 0.0
    %292 = vmatprep.subr.mxu0 0.0
    %293 = vmatpush1.msra.mxu0 0.0
    %294 = vmatprep.subr.mxu0 0.0
    %295 = vmatpush1.msra.mxu0 0.0
    %296 = vmatprep.subr.mxu0 0.0
    %297 = vmatpush1.msra.mxu0 0.0
    %298 = vmatprep.subr.mxu0 0.0
    %299 = vmatpush1.msra.mxu0 0.0
    %300 = vmatprep.subr.mxu0 0.0
    %301 = vmatpush1.msra.mxu0 0.0
    %302 = vmatprep.subr.mxu0 0.0
    %303 = vmatpush1.msra.mxu0 0.0
    %304 = vmatprep.subr.mxu0 0.0
    %305 = vmatpush1.msra.mxu0 0.0
    %306 = vmatprep.subr.mxu0 0.0
    %307 = vmatpush1.msra.mxu0 0.0
    %308 = vmatprep.subr.mxu0 0.0
    %309 = vmatpush1.msra.mxu0 0.0
    %310 = vmatprep.subr.mxu0 0.0
    %311 = vmatpush1.msra.mxu0 0.0
    %312 = vmatprep.subr.mxu0 0.0
    %313 = vmatpush1.msra.mxu0 0.0
    %314 = vmatprep.subr.mxu0 0.0
    %315 = vmatpush1.msra.mxu0 0.0
    %316 = vmatprep.subr.mxu0 0.0
    %317 = vmatpush1.msra.mxu0 0.0
    %318 = vmatprep.subr.mxu0 0.0
    %319 = vmatpush1.msra.mxu0 0.0
    %320 = vmatprep.subr.mxu0 0.0
    %321 = vmatpush1.msra.mxu0 0.0
    %322 = vmatprep.subr.mxu0 0.0
    %323 = vmatpush1.msra.mxu0 0.0
    %324 = vmatprep.subr.mxu0 0.0
    %325 = vmatpush1.msra.mxu0 0.0
    %326 = vmatprep.subr.mxu0 0.0
    %327 = vmatpush1.msra.mxu0 0.0
    %328 = vmatprep.subr.mxu0 0.0
    %329 = vmatpush1.msra.mxu0 0.0
    %330 = vmatprep.subr.mxu0 0.0
    %331 = vmatpush1.msra.mxu0 0.0
    %332 = vmatprep.subr.mxu0 0.0
    %333 = vmatpush1.msra.mxu0 0.0
    %334 = vmatprep.mubr.f32.mxu0 0.0
    %335 = vmatmul.mubr.f32.gmra.mrb[0].mxu0 %v268
    %v336 = vpop.f32.mrb[0].mxu0
    %v337 = vadd.f32 0.0, %v336
    %v338 = vpop.f32.mrb[0].mxu0
    %339 = vdwg.mxu0
    %v340 = vrot.slane %v32, 4
    %v341 = vrot.slane %v33, 3
    %v342 = vsel %vm37, %v341, %v340
    %v343 = vsel %vm39, %v342, 0
    %345 = vmatprep.subr.mxu0 0.0
    %346 = vmatpush1.msra.mxu0 %v44
    %347 = vmatprep.subr.mxu0 0.0
    %348 = vmatpush1.msra.mxu0 0.0
    %349 = vmatprep.subr.mxu0 0.0
    %350 = vmatpush1.msra.mxu0 0.0
    %351 = vmatprep.subr.mxu0 0.0
    %352 = vmatpush1.msra.mxu0 0.0
    %353 = vmatprep.subr.mxu0 0.0
    %354 = vmatpush1.msra.mxu0 0.0
    %355 = vmatprep.subr.mxu0 0.0
    %356 = vmatpush1.msra.mxu0 0.0
    %357 = vmatprep.subr.mxu0 0.0
    %358 = vmatpush1.msra.mxu0 0.0
    %359 = vmatprep.subr.mxu0 0.0
    %360 = vmatpush1.msra.mxu0 0.0
    %361 = vmatprep.subr.mxu0 0.0
    %362 = vmatpush1.msra.mxu0 0.0
    %363 = vmatprep.subr.mxu0 0.0
    %364 = vmatpush1.msra.mxu0 0.0
    %365 = vmatprep.subr.mxu0 0.0
    %366 = vmatpush1.msra.mxu0 0.0
    %367 = vmatprep.subr.mxu0 0.0
    %368 = vmatpush1.msra.mxu0 0.0
    %369 = vmatprep.subr.mxu0 0.0
    %370 = vmatpush1.msra.mxu0 0.0
    %371 = vmatprep.subr.mxu0 0.0
    %372 = vmatpush1.msra.mxu0 0.0
    %373 = vmatprep.subr.mxu0 0.0
    %374 = vmatpush1.msra.mxu0 0.0
    %375 = vmatprep.subr.mxu0 0.0
    %376 = vmatpush1.msra.mxu0 0.0
    %377 = vmatprep.subr.mxu0 0.0
    %378 = vmatpush1.msra.mxu0 0.0
    %379 = vmatprep.subr.mxu0 0.0
    %380 = vmatpush1.msra.mxu0 0.0
    %381 = vmatprep.subr.mxu0 0.0
    %382 = vmatpush1.msra.mxu0 0.0
    %383 = vmatprep.subr.mxu0 0.0
    %384 = vmatpush1.msra.mxu0 0.0
    %385 = vmatprep.subr.mxu0 0.0
    %386 = vmatpush1.msra.mxu0 0.0
    %387 = vmatprep.subr.mxu0 0.0
    %388 = vmatpush1.msra.mxu0 0.0
    %389 = vmatprep.subr.mxu0 0.0
    %390 = vmatpush1.msra.mxu0 0.0
    %391 = vmatprep.subr.mxu0 0.0
    %392 = vmatpush1.msra.mxu0 0.0
    %393 = vmatprep.subr.mxu0 0.0
    %394 = vmatpush1.msra.mxu0 0.0
    %395 = vmatprep.subr.mxu0 0.0
    %396 = vmatpush1.msra.mxu0 0.0
    %397 = vmatprep.subr.mxu0 0.0
    %398 = vmatpush1.msra.mxu0 0.0
    %399 = vmatprep.subr.mxu0 0.0
    %400 = vmatpush1.msra.mxu0 0.0
    %401 = vmatprep.subr.mxu0 0.0
    %402 = vmatpush1.msra.mxu0 0.0
    %403 = vmatprep.subr.mxu0 0.0
    %404 = vmatpush1.msra.mxu0 0.0
    %405 = vmatprep.subr.mxu0 0.0
    %406 = vmatpush1.msra.mxu0 0.0
    %407 = vmatprep.subr.mxu0 0.0
    %408 = vmatpush1.msra.mxu0 0.0
    %409 = vmatprep.mubr.f32.mxu0 0.0
    %410 = vmatmul.mubr.f32.gmra.mrb[0].mxu0 %v343
    %v411 = vpop.f32.mrb[0].mxu0
    %v412 = vadd.f32 0.0, %v411
    %v413 = vpop.f32.mrb[0].mxu0
    %414 = vdwg.mxu0
    %v415 = vrot.slane %v32, 5
    %v416 = vrot.slane %v33, 4
    %v417 = vsel %vm37, %v416, %v415
    %v418 = vsel %vm39, %v417, 0
    %420 = vmatprep.subr.mxu0 0.0
    %421 = vmatpush1.msra.mxu0 %v44
    %422 = vmatprep.subr.mxu0 0.0
    %423 = vmatpush1.msra.mxu0 0.0
    %424 = vmatprep.subr.mxu0 0.0
    %425 = vmatpush1.msra.mxu0 0.0
    %426 = vmatprep.subr.mxu0 0.0
    %427 = vmatpush1.msra.mxu0 0.0
    %428 = vmatprep.subr.mxu0 0.0
    %429 = vmatpush1.msra.mxu0 0.0
    %430 = vmatprep.subr.mxu0 0.0
    %431 = vmatpush1.msra.mxu0 0.0
    %432 = vmatprep.subr.mxu0 0.0
    %433 = vmatpush1.msra.mxu0 0.0
    %434 = vmatprep.subr.mxu0 0.0
    %435 = vmatpush1.msra.mxu0 0.0
    %436 = vmatprep.subr.mxu0 0.0
    %437 = vmatpush1.msra.mxu0 0.0
    %438 = vmatprep.subr.mxu0 0.0
    %439 = vmatpush1.msra.mxu0 0.0
    %440 = vmatprep.subr.mxu0 0.0
    %441 = vmatpush1.msra.mxu0 0.0
    %442 = vmatprep.subr.mxu0 0.0
    %443 = vmatpush1.msra.mxu0 0.0
    %444 = vmatprep.subr.mxu0 0.0
    %445 = vmatpush1.msra.mxu0 0.0
    %446 = vmatprep.subr.mxu0 0.0
    %447 = vmatpush1.msra.mxu0 0.0
    %448 = vmatprep.subr.mxu0 0.0
    %449 = vmatpush1.msra.mxu0 0.0
    %450 = vmatprep.subr.mxu0 0.0
    %451 = vmatpush1.msra.mxu0 0.0
    %452 = vmatprep.subr.mxu0 0.0
    %453 = vmatpush1.msra.mxu0 0.0
    %454 = vmatprep.subr.mxu0 0.0
    %455 = vmatpush1.msra.mxu0 0.0
    %456 = vmatprep.subr.mxu0 0.0
    %457 = vmatpush1.msra.mxu0 0.0
    %458 = vmatprep.subr.mxu0 0.0
    %459 = vmatpush1.msra.mxu0 0.0
    %460 = vmatprep.subr.mxu0 0.0
    %461 = vmatpush1.msra.mxu0 0.0
    %462 = vmatprep.subr.mxu0 0.0
    %463 = vmatpush1.msra.mxu0 0.0
    %464 = vmatprep.subr.mxu0 0.0
    %465 = vmatpush1.msra.mxu0 0.0
    %466 = vmatprep.subr.mxu0 0.0
    %467 = vmatpush1.msra.mxu0 0.0
    %468 = vmatprep.subr.mxu0 0.0
    %469 = vmatpush1.msra.mxu0 0.0
    %470 = vmatprep.subr.mxu0 0.0
    %471 = vmatpush1.msra.mxu0 0.0
    %472 = vmatprep.subr.mxu0 0.0
    %473 = vmatpush1.msra.mxu0 0.0
    %474 = vmatprep.subr.mxu0 0.0
    %475 = vmatpush1.msra.mxu0 0.0
    %476 = vmatprep.subr.mxu0 0.0
    %477 = vmatpush1.msra.mxu0 0.0
    %478 = vmatprep.subr.mxu0 0.0
    %479 = vmatpush1.msra.mxu0 0.0
    %480 = vmatprep.subr.mxu0 0.0
    %481 = vmatpush1.msra.mxu0 0.0
    %482 = vmatprep.subr.mxu0 0.0
    %483 = vmatpush1.msra.mxu0 0.0
    %484 = vmatprep.mubr.f32.mxu0 0.0
    %485 = vmatmul.mubr.f32.gmra.mrb[0].mxu0 %v418
    %v486 = vpop.f32.mrb[0].mxu0
    %v487 = vadd.f32 0.0, %v486
    %v488 = vpop.f32.mrb[0].mxu0
    %489 = vdwg.mxu0
    %v490 = vrot.slane %v32, 6
    %v491 = vrot.slane %v33, 5
    %v492 = vsel %vm37, %v491, %v490
    %v493 = vsel %vm39, %v492, 0
    %495 = vmatprep.subr.mxu0 0.0
    %496 = vmatpush1.msra.mxu0 %v44
    %497 = vmatprep.subr.mxu0 0.0
    %498 = vmatpush1.msra.mxu0 0.0
    %499 = vmatprep.subr.mxu0 0.0
    %500 = vmatpush1.msra.mxu0 0.0
    %501 = vmatprep.subr.mxu0 0.0
    %502 = vmatpush1.msra.mxu0 0.0
    %503 = vmatprep.subr.mxu0 0.0
    %504 = vmatpush1.msra.mxu0 0.0
    %505 = vmatprep.subr.mxu0 0.0
    %506 = vmatpush1.msra.mxu0 0.0
    %507 = vmatprep.subr.mxu0 0.0
    %508 = vmatpush1.msra.mxu0 0.0
    %509 = vmatprep.subr.mxu0 0.0
    %510 = vmatpush1.msra.mxu0 0.0
    %511 = vmatprep.subr.mxu0 0.0
    %512 = vmatpush1.msra.mxu0 0.0
    %513 = vmatprep.subr.mxu0 0.0
    %514 = vmatpush1.msra.mxu0 0.0
    %515 = vmatprep.subr.mxu0 0.0
    %516 = vmatpush1.msra.mxu0 0.0
    %517 = vmatprep.subr.mxu0 0.0
    %518 = vmatpush1.msra.mxu0 0.0
    %519 = vmatprep.subr.mxu0 0.0
    %520 = vmatpush1.msra.mxu0 0.0
    %521 = vmatprep.subr.mxu0 0.0
    %522 = vmatpush1.msra.mxu0 0.0
    %523 = vmatprep.subr.mxu0 0.0
    %524 = vmatpush1.msra.mxu0 0.0
    %525 = vmatprep.subr.mxu0 0.0
    %526 = vmatpush1.msra.mxu0 0.0
    %527 = vmatprep.subr.mxu0 0.0
    %528 = vmatpush1.msra.mxu0 0.0
    %529 = vmatprep.subr.mxu0 0.0
    %530 = vmatpush1.msra.mxu0 0.0
    %531 = vmatprep.subr.mxu0 0.0
    %532 = vmatpush1.msra.mxu0 0.0
    %533 = vmatprep.subr.mxu0 0.0
    %534 = vmatpush1.msra.mxu0 0.0
    %535 = vmatprep.subr.mxu0 0.0
    %536 = vmatpush1.msra.mxu0 0.0
    %537 = vmatprep.subr.mxu0 0.0
    %538 = vmatpush1.msra.mxu0 0.0
    %539 = vmatprep.subr.mxu0 0.0
    %540 = vmatpush1.msra.mxu0 0.0
    %541 = vmatprep.subr.mxu0 0.0
    %542 = vmatpush1.msra.mxu0 0.0
    %543 = vmatprep.subr.mxu0 0.0
    %544 = vmatpush1.msra.mxu0 0.0
    %545 = vmatprep.subr.mxu0 0.0
    %546 = vmatpush1.msra.mxu0 0.0
    %547 = vmatprep.subr.mxu0 0.0
    %548 = vmatpush1.msra.mxu0 0.0
    %549 = vmatprep.subr.mxu0 0.0
    %550 = vmatpush1.msra.mxu0 0.0
    %551 = vmatprep.subr.mxu0 0.0
    %552 = vmatpush1.msra.mxu0 0.0
    %553 = vmatprep.subr.mxu0 0.0
    %554 = vmatpush1.msra.mxu0 0.0
    %555 = vmatprep.subr.mxu0 0.0
    %556 = vmatpush1.msra.mxu0 0.0
    %557 = vmatprep.subr.mxu0 0.0
    %558 = vmatpush1.msra.mxu0 0.0
    %559 = vmatprep.mubr.f32.mxu0 0.0
    %560 = vmatmul.mubr.f32.gmra.mrb[0].mxu0 %v493
    %v561 = vpop.f32.mrb[0].mxu0
    %v562 = vadd.f32 0.0, %v561
    %v563 = vpop.f32.mrb[0].mxu0
    %564 = vdwg.mxu0
    %v565 = vrot.slane %v32, 7
    %v566 = vrot.slane %v33, 6
    %v567 = vsel %vm37, %v566, %v565
    %v568 = vsel %vm39, %v567, 0
    %570 = vmatprep.subr.mxu0 0.0
    %571 = vmatpush1.msra.mxu0 %v44
    %572 = vmatprep.subr.mxu0 0.0
    %573 = vmatpush1.msra.mxu0 0.0
    %574 = vmatprep.subr.mxu0 0.0
    %575 = vmatpush1.msra.mxu0 0.0
    %576 = vmatprep.subr.mxu0 0.0
    %577 = vmatpush1.msra.mxu0 0.0
    %578 = vmatprep.subr.mxu0 0.0
    %579 = vmatpush1.msra.mxu0 0.0
    %580 = vmatprep.subr.mxu0 0.0
    %581 = vmatpush1.msra.mxu0 0.0
    %582 = vmatprep.subr.mxu0 0.0
    %583 = vmatpush1.msra.mxu0 0.0
    %584 = vmatprep.subr.mxu0 0.0
    %585 = vmatpush1.msra.mxu0 0.0
    %586 = vmatprep.subr.mxu0 0.0
    %587 = vmatpush1.msra.mxu0 0.0
    %588 = vmatprep.subr.mxu0 0.0
    %589 = vmatpush1.msra.mxu0 0.0
    %590 = vmatprep.subr.mxu0 0.0
    %591 = vmatpush1.msra.mxu0 0.0
    %592 = vmatprep.subr.mxu0 0.0
    %593 = vmatpush1.msra.mxu0 0.0
    %594 = vmatprep.subr.mxu0 0.0
    %595 = vmatpush1.msra.mxu0 0.0
    %596 = vmatprep.subr.mxu0 0.0
    %597 = vmatpush1.msra.mxu0 0.0
    %598 = vmatprep.subr.mxu0 0.0
    %599 = vmatpush1.msra.mxu0 0.0
    %600 = vmatprep.subr.mxu0 0.0
    %601 = vmatpush1.msra.mxu0 0.0
    %602 = vmatprep.subr.mxu0 0.0
    %603 = vmatpush1.msra.mxu0 0.0
    %604 = vmatprep.subr.mxu0 0.0
    %605 = vmatpush1.msra.mxu0 0.0
    %606 = vmatprep.subr.mxu0 0.0
    %607 = vmatpush1.msra.mxu0 0.0
    %608 = vmatprep.subr.mxu0 0.0
    %609 = vmatpush1.msra.mxu0 0.0
    %610 = vmatprep.subr.mxu0 0.0
    %611 = vmatpush1.msra.mxu0 0.0
    %612 = vmatprep.subr.mxu0 0.0
    %613 = vmatpush1.msra.mxu0 0.0
    %614 = vmatprep.subr.mxu0 0.0
    %615 = vmatpush1.msra.mxu0 0.0
    %616 = vmatprep.subr.mxu0 0.0
    %617 = vmatpush1.msra.mxu0 0.0
    %618 = vmatprep.subr.mxu0 0.0
    %619 = vmatpush1.msra.mxu0 0.0
    %620 = vmatprep.subr.mxu0 0.0
    %621 = vmatpush1.msra.mxu0 0.0
    %622 = vmatprep.subr.mxu0 0.0
    %623 = vmatpush1.msra.mxu0 0.0
    %624 = vmatprep.subr.mxu0 0.0
    %625 = vmatpush1.msra.mxu0 0.0
    %626 = vmatprep.subr.mxu0 0.0
    %627 = vmatpush1.msra.mxu0 0.0
    %628 = vmatprep.subr.mxu0 0.0
    %629 = vmatpush1.msra.mxu0 0.0
    %630 = vmatprep.subr.mxu0 0.0
    %631 = vmatpush1.msra.mxu0 0.0
    %632 = vmatprep.subr.mxu0 0.0
    %633 = vmatpush1.msra.mxu0 0.0
    %634 = vmatprep.mubr.f32.mxu0 0.0
    %635 = vmatmul.mubr.f32.gmra.mrb[0].mxu0 %v568
    %v636 = vpop.f32.mrb[0].mxu0
    %v637 = vadd.f32 0.0, %v636
    %v638 = vpop.f32.mrb[0].mxu0
    %639 = vdwg.mxu0
    %v640 = vlaneseq
    %v641 = vand.u32 %v640, 127
    %vm642 = vcmp.lt.s32.totalorder %v641, 32
    %vm643 = vcmask 392192
    %v645 = vsel %vm643, 0.0, 0
    %647 = vmatprep.subr.mxu0 0.0
    %648 = vmatpush1.msra.mxu0 %v26
    %649 = vmatprep.subr.mxu0 0.0
    %650 = vmatpush1.msra.mxu0 %v27
    %651 = vmatprep.subr.mxu0 0.0
    %652 = vmatpush1.msra.mxu0 %v28
    %653 = vmatprep.subr.mxu0 0.0
    %654 = vmatpush1.msra.mxu0 %v29
    %655 = vmatprep.subr.mxu0 0.0
    %656 = vmatpush1.msra.mxu0 %v30
    %657 = vmatprep.subr.mxu0 0.0
    %658 = vmatpush1.msra.mxu0 %v31
    %659 = vmatprep.subr.mxu0 0.0
    %660 = vmatpush1.msra.mxu0 0.0
    %661 = vmatprep.subr.mxu0 0.0
    %662 = vmatpush1.msra.mxu0 0.0
    %663 = vmatprep.subr.mxu0 0.0
    %664 = vmatpush1.msra.mxu0 0.0
    %665 = vmatprep.subr.mxu0 0.0
    %666 = vmatpush1.msra.mxu0 0.0
    %667 = vmatprep.subr.mxu0 0.0
    %668 = vmatpush1.msra.mxu0 0.0
    %669 = vmatprep.subr.mxu0 0.0
    %670 = vmatpush1.msra.mxu0 0.0
    %671 = vmatprep.subr.mxu0 0.0
    %672 = vmatpush1.msra.mxu0 0.0
    %673 = vmatprep.subr.mxu0 0.0
    %674 = vmatpush1.msra.mxu0 0.0
    %675 = vmatprep.subr.mxu0 0.0
    %676 = vmatpush1.msra.mxu0 0.0
    %677 = vmatprep.subr.mxu0 0.0
    %678 = vmatpush1.msra.mxu0 0.0
    %679 = vmatprep.subr.mxu0 0.0
    %680 = vmatpush1.msra.mxu0 0.0
    %681 = vmatprep.subr.mxu0 0.0
    %682 = vmatpush1.msra.mxu0 0.0
    %683 = vmatprep.subr.mxu0 0.0
    %684 = vmatpush1.msra.mxu0 0.0
    %685 = vmatprep.subr.mxu0 0.0
    %686 = vmatpush1.msra.mxu0 0.0
    %687 = vmatprep.subr.mxu0 0.0
    %688 = vmatpush1.msra.mxu0 0.0
    %689 = vmatprep.subr.mxu0 0.0
    %690 = vmatpush1.msra.mxu0 0.0
    %691 = vmatprep.subr.mxu0 0.0
    %692 = vmatpush1.msra.mxu0 0.0
    %693 = vmatprep.subr.mxu0 0.0
    %694 = vmatpush1.msra.mxu0 0.0
    %695 = vmatprep.subr.mxu0 0.0
    %696 = vmatpush1.msra.mxu0 0.0
    %697 = vmatprep.subr.mxu0 0.0
    %698 = vmatpush1.msra.mxu0 0.0
    %699 = vmatprep.subr.mxu0 0.0
    %700 = vmatpush1.msra.mxu0 0.0
    %701 = vmatprep.subr.mxu0 0.0
    %702 = vmatpush1.msra.mxu0 0.0
    %703 = vmatprep.subr.mxu0 0.0
    %704 = vmatpush1.msra.mxu0 0.0
    %705 = vmatprep.subr.mxu0 0.0
    %706 = vmatpush1.msra.mxu0 0.0
    %707 = vmatprep.subr.mxu0 0.0
    %708 = vmatpush1.msra.mxu0 0.0
    %709 = vmatprep.subr.mxu0 0.0
    %710 = vmatpush1.msra.mxu0 0.0
    %711 = vmatprep.mubr.f32.mxu0 0.0
    %712 = vmatmul.mubr.f32.gmra.mrb[0].mxu0 %v645
    %v713 = vpop.f32.mrb[0].mxu0
    %v714 = vadd.f32 %v113, %v713
    %v715 = vpop.f32.mrb[0].mxu0
    %716 = vdwg.mxu0
    %v717 = vtanh.pop %v714
    %v718 = vsel %vm642, %v717, %v714
    %v721 = vunpack.c.l.s4 1966171168
    %v722 = vunpack.c.0.s8 %v721
    %v723 = vlaneseq
    %v724 = vshrl.u32 %v723, 7
    %v725 = vsub.s32 %v722, %v724
    %v726 = vrot.slane %v718, %v725
    %v727 = vcombine.high %v726, %v726
    %v729 = vunpack.c.l.s4 1966171168
    %v730 = vunpack.c.0.s8 %v729
    %v731 = vlaneseq
    %v732 = vshrl.u32 %v731, 7
    %v733 = vsub.s32 %v730, %v732
    %v734 = vrot.slane %v726, %v733
    %v736 = vunpack.c.l.s4 1966171168
    %v737 = vunpack.c.0.s8 %v736
    %v738 = vlaneseq
    %v739 = vshrl.u32 %v738, 7
    %v740 = vsub.s32 %v737, %v739
    %v741 = vrot.slane %v727, %v740
    %vm744 = vcmask 253952
    %745 = vst.msk [vmem:[#allocation2] sm:$0x1] %vm744, %v734
    %746 = vst.msk [vmem:[#allocation2 + $0x8] sm:$0x1] %vm744, %v741
    %v747 = vsel %vm643, %v718, 0
    %749 = vmatprep.subr.mxu0 0.0
    %750 = vmatpush1.msra.mxu0 %v26
    %751 = vmatprep.subr.mxu0 0.0
    %752 = vmatpush1.msra.mxu0 %v27
    %753 = vmatprep.subr.mxu0 0.0
    %754 = vmatpush1.msra.mxu0 %v28
    %755 = vmatprep.subr.mxu0 0.0
    %756 = vmatpush1.msra.mxu0 %v29
    %757 = vmatprep.subr.mxu0 0.0
    %758 = vmatpush1.msra.mxu0 %v30
    %759 = vmatprep.subr.mxu0 0.0
    %760 = vmatpush1.msra.mxu0 %v31
    %761 = vmatprep.subr.mxu0 0.0
    %762 = vmatpush1.msra.mxu0 0.0
    %763 = vmatprep.subr.mxu0 0.0
    %764 = vmatpush1.msra.mxu0 0.0
    %765 = vmatprep.subr.mxu0 0.0
    %766 = vmatpush1.msra.mxu0 0.0
    %767 = vmatprep.subr.mxu0 0.0
    %768 = vmatpush1.msra.mxu0 0.0
    %769 = vmatprep.subr.mxu0 0.0
    %770 = vmatpush1.msra.mxu0 0.0
    %771 = vmatprep.subr.mxu0 0.0
    %772 = vmatpush1.msra.mxu0 0.0
    %773 = vmatprep.subr.mxu0 0.0
    %774 = vmatpush1.msra.mxu0 0.0
    %775 = vmatprep.subr.mxu0 0.0
    %776 = vmatpush1.msra.mxu0 0.0
    %777 = vmatprep.subr.mxu0 0.0
    %778 = vmatpush1.msra.mxu0 0.0
    %779 = vmatprep.subr.mxu0 0.0
    %780 = vmatpush1.msra.mxu0 0.0
    %781 = vmatprep.subr.mxu0 0.0
    %782 = vmatpush1.msra.mxu0 0.0
    %783 = vmatprep.subr.mxu0 0.0
    %784 = vmatpush1.msra.mxu0 0.0
    %785 = vmatprep.subr.mxu0 0.0
    %786 = vmatpush1.msra.mxu0 0.0
    %787 = vmatprep.subr.mxu0 0.0
    %788 = vmatpush1.msra.mxu0 0.0
    %789 = vmatprep.subr.mxu0 0.0
    %790 = vmatpush1.msra.mxu0 0.0
    %791 = vmatprep.subr.mxu0 0.0
    %792 = vmatpush1.msra.mxu0 0.0
    %793 = vmatprep.subr.mxu0 0.0
    %794 = vmatpush1.msra.mxu0 0.0
    %795 = vmatprep.subr.mxu0 0.0
    %796 = vmatpush1.msra.mxu0 0.0
    %797 = vmatprep.subr.mxu0 0.0
    %798 = vmatpush1.msra.mxu0 0.0
    %799 = vmatprep.subr.mxu0 0.0
    %800 = vmatpush1.msra.mxu0 0.0
    %801 = vmatprep.subr.mxu0 0.0
    %802 = vmatpush1.msra.mxu0 0.0
    %803 = vmatprep.subr.mxu0 0.0
    %804 = vmatpush1.msra.mxu0 0.0
    %805 = vmatprep.subr.mxu0 0.0
    %806 = vmatpush1.msra.mxu0 0.0
    %807 = vmatprep.subr.mxu0 0.0
    %808 = vmatpush1.msra.mxu0 0.0
    %809 = vmatprep.subr.mxu0 0.0
    %810 = vmatpush1.msra.mxu0 0.0
    %811 = vmatprep.subr.mxu0 0.0
    %812 = vmatpush1.msra.mxu0 0.0
    %813 = vmatprep.mubr.f32.mxu0 0.0
    %814 = vmatmul.mubr.f32.gmra.mrb[0].mxu0 %v747
    %v815 = vpop.f32.mrb[0].mxu0
    %v816 = vadd.f32 %v187, %v815
    %v817 = vpop.f32.mrb[0].mxu0
    %818 = vdwg.mxu0
    %v819 = vtanh.pop %v816
    %v820 = vsel %vm642, %v819, %v816
    %v823 = vunpack.c.l.s4 1966171168
    %v824 = vunpack.c.0.s8 %v823
    %v825 = vlaneseq
    %v826 = vshrl.u32 %v825, 7
    %v827 = vsub.s32 %v824, %v826
    %v828 = vrot.slane %v820, %v827
    %v829 = vcombine.high %v828, %v828
    %v831 = vunpack.c.l.s4 1966171168
    %v832 = vunpack.c.0.s8 %v831
    %v833 = vlaneseq
    %v834 = vshrl.u32 %v833, 7
    %v835 = vsub.s32 %v832, %v834
    %v836 = vrot.slane %v828, %v835
    %v838 = vunpack.c.l.s4 1966171168
    %v839 = vunpack.c.0.s8 %v838
    %v840 = vlaneseq
    %v841 = vshrl.u32 %v840, 7
    %v842 = vsub.s32 %v839, %v841
    %v843 = vrot.slane %v829, %v842
    %846 = vst.msk [vmem:[#allocation2 + $0x1] sm:$0x1] %vm744, %v836
    %847 = vst.msk [vmem:[#allocation2 + $0x9] sm:$0x1] %vm744, %v843
    %v848 = vsel %vm643, %v820, 0
    %850 = vmatprep.subr.mxu0 0.0
    %851 = vmatpush1.msra.mxu0 %v26
    %852 = vmatprep.subr.mxu0 0.0
    %853 = vmatpush1.msra.mxu0 %v27
    %854 = vmatprep.subr.mxu0 0.0
    %855 = vmatpush1.msra.mxu0 %v28
    %856 = vmatprep.subr.mxu0 0.0
    %857 = vmatpush1.msra.mxu0 %v29
    %858 = vmatprep.subr.mxu0 0.0
    %859 = vmatpush1.msra.mxu0 %v30
    %860 = vmatprep.subr.mxu0 0.0
    %861 = vmatpush1.msra.mxu0 %v31
    %862 = vmatprep.subr.mxu0 0.0
    %863 = vmatpush1.msra.mxu0 0.0
    %864 = vmatprep.subr.mxu0 0.0
    %865 = vmatpush1.msra.mxu0 0.0
    %866 = vmatprep.subr.mxu0 0.0
    %867 = vmatpush1.msra.mxu0 0.0
    %868 = vmatprep.subr.mxu0 0.0
    %869 = vmatpush1.msra.mxu0 0.0
    %870 = vmatprep.subr.mxu0 0.0
    %871 = vmatpush1.msra.mxu0 0.0
    %872 = vmatprep.subr.mxu0 0.0
    %873 = vmatpush1.msra.mxu0 0.0
    %874 = vmatprep.subr.mxu0 0.0
    %875 = vmatpush1.msra.mxu0 0.0
    %876 = vmatprep.subr.mxu0 0.0
    %877 = vmatpush1.msra.mxu0 0.0
    %878 = vmatprep.subr.mxu0 0.0
    %879 = vmatpush1.msra.mxu0 0.0
    %880 = vmatprep.subr.mxu0 0.0
    %881 = vmatpush1.msra.mxu0 0.0
    %882 = vmatprep.subr.mxu0 0.0
    %883 = vmatpush1.msra.mxu0 0.0
    %884 = vmatprep.subr.mxu0 0.0
    %885 = vmatpush1.msra.mxu0 0.0
    %886 = vmatprep.subr.mxu0 0.0
    %887 = vmatpush1.msra.mxu0 0.0
    %888 = vmatprep.subr.mxu0 0.0
    %889 = vmatpush1.msra.mxu0 0.0
    %890 = vmatprep.subr.mxu0 0.0
    %891 = vmatpush1.msra.mxu0 0.0
    %892 = vmatprep.subr.mxu0 0.0
    %893 = vmatpush1.msra.mxu0 0.0
    %894 = vmatprep.subr.mxu0 0.0
    %895 = vmatpush1.msra.mxu0 0.0
    %896 = vmatprep.subr.mxu0 0.0
    %897 = vmatpush1.msra.mxu0 0.0
    %898 = vmatprep.subr.mxu0 0.0
    %899 = vmatpush1.msra.mxu0 0.0
    %900 = vmatprep.subr.mxu0 0.0
    %901 = vmatpush1.msra.mxu0 0.0
    %902 = vmatprep.subr.mxu0 0.0
    %903 = vmatpush1.msra.mxu0 0.0
    %904 = vmatprep.subr.mxu0 0.0
    %905 = vmatpush1.msra.mxu0 0.0
    %906 = vmatprep.subr.mxu0 0.0
    %907 = vmatpush1.msra.mxu0 0.0
    %908 = vmatprep.subr.mxu0 0.0
    %909 = vmatpush1.msra.mxu0 0.0
    %910 = vmatprep.subr.mxu0 0.0
    %911 = vmatpush1.msra.mxu0 0.0
    %912 = vmatprep.subr.mxu0 0.0
    %913 = vmatpush1.msra.mxu0 0.0
    %914 = vmatprep.mubr.f32.mxu0 0.0
    %915 = vmatmul.mubr.f32.gmra.mrb[0].mxu0 %v848
    %v916 = vpop.f32.mrb[0].mxu0
    %v917 = vadd.f32 %v262, %v916
    %v918 = vpop.f32.mrb[0].mxu0
    %919 = vdwg.mxu0
    %v920 = vtanh.pop %v917
    %v921 = vsel %vm642, %v920, %v917
    %v924 = vunpack.c.l.s4 1966171168
    %v925 = vunpack.c.0.s8 %v924
    %v926 = vlaneseq
    %v927 = vshrl.u32 %v926, 7
    %v928 = vsub.s32 %v925, %v927
    %v929 = vrot.slane %v921, %v928
    %v930 = vcombine.high %v929, %v929
    %v932 = vunpack.c.l.s4 1966171168
    %v933 = vunpack.c.0.s8 %v932
    %v934 = vlaneseq
    %v935 = vshrl.u32 %v934, 7
    %v936 = vsub.s32 %v933, %v935
    %v937 = vrot.slane %v929, %v936
    %v939 = vunpack.c.l.s4 1966171168
    %v940 = vunpack.c.0.s8 %v939
    %v941 = vlaneseq
    %v942 = vshrl.u32 %v941, 7
    %v943 = vsub.s32 %v940, %v942
    %v944 = vrot.slane %v930, %v943
    %947 = vst.msk [vmem:[#allocation2 + $0x2] sm:$0x1] %vm744, %v937
    %948 = vst.msk [vmem:[#allocation2 + $0xa] sm:$0x1] %vm744, %v944
    %v949 = vsel %vm643, %v921, 0
    %951 = vmatprep.subr.mxu0 0.0
    %952 = vmatpush1.msra.mxu0 %v26
    %953 = vmatprep.subr.mxu0 0.0
    %954 = vmatpush1.msra.mxu0 %v27
    %955 = vmatprep.subr.mxu0 0.0
    %956 = vmatpush1.msra.mxu0 %v28
    %957 = vmatprep.subr.mxu0 0.0
    %958 = vmatpush1.msra.mxu0 %v29
    %959 = vmatprep.subr.mxu0 0.0
    %960 = vmatpush1.msra.mxu0 %v30
    %961 = vmatprep.subr.mxu0 0.0
    %962 = vmatpush1.msra.mxu0 %v31
    %963 = vmatprep.subr.mxu0 0.0
    %964 = vmatpush1.msra.mxu0 0.0
    %965 = vmatprep.subr.mxu0 0.0
    %966 = vmatpush1.msra.mxu0 0.0
    %967 = vmatprep.subr.mxu0 0.0
    %968 = vmatpush1.msra.mxu0 0.0
    %969 = vmatprep.subr.mxu0 0.0
    %970 = vmatpush1.msra.mxu0 0.0
    %971 = vmatprep.subr.mxu0 0.0
    %972 = vmatpush1.msra.mxu0 0.0
    %973 = vmatprep.subr.mxu0 0.0
    %974 = vmatpush1.msra.mxu0 0.0
    %975 = vmatprep.subr.mxu0 0.0
    %976 = vmatpush1.msra.mxu0 0.0
    %977 = vmatprep.subr.mxu0 0.0
    %978 = vmatpush1.msra.mxu0 0.0
    %979 = vmatprep.subr.mxu0 0.0
    %980 = vmatpush1.msra.mxu0 0.0
    %981 = vmatprep.subr.mxu0 0.0
    %982 = vmatpush1.msra.mxu0 0.0
    %983 = vmatprep.subr.mxu0 0.0
    %984 = vmatpush1.msra.mxu0 0.0
    %985 = vmatprep.subr.mxu0 0.0
    %986 = vmatpush1.msra.mxu0 0.0
    %987 = vmatprep.subr.mxu0 0.0
    %988 = vmatpush1.msra.mxu0 0.0
    %989 = vmatprep.subr.mxu0 0.0
    %990 = vmatpush1.msra.mxu0 0.0
    %991 = vmatprep.subr.mxu0 0.0
    %992 = vmatpush1.msra.mxu0 0.0
    %993 = vmatprep.subr.mxu0 0.0
    %994 = vmatpush1.msra.mxu0 0.0
    %995 = vmatprep.subr.mxu0 0.0
    %996 = vmatpush1.msra.mxu0 0.0
    %997 = vmatprep.subr.mxu0 0.0
    %998 = vmatpush1.msra.mxu0 0.0
    %999 = vmatprep.subr.mxu0 0.0
    %1000 = vmatpush1.msra.mxu0 0.0
    %1001 = vmatprep.subr.mxu0 0.0
    %1002 = vmatpush1.msra.mxu0 0.0
    %1003 = vmatprep.subr.mxu0 0.0
    %1004 = vmatpush1.msra.mxu0 0.0
    %1005 = vmatprep.subr.mxu0 0.0
    %1006 = vmatpush1.msra.mxu0 0.0
    %1007 = vmatprep.subr.mxu0 0.0
    %1008 = vmatpush1.msra.mxu0 0.0
    %1009 = vmatprep.subr.mxu0 0.0
    %1010 = vmatpush1.msra.mxu0 0.0
    %1011 = vmatprep.subr.mxu0 0.0
    %1012 = vmatpush1.msra.mxu0 0.0
    %1013 = vmatprep.subr.mxu0 0.0
    %1014 = vmatpush1.msra.mxu0 0.0
    %1015 = vmatprep.mubr.f32.mxu0 0.0
    %1016 = vmatmul.mubr.f32.gmra.mrb[0].mxu0 %v949
    %v1017 = vpop.f32.mrb[0].mxu0
    %v1018 = vadd.f32 %v337, %v1017
    %v1019 = vpop.f32.mrb[0].mxu0
    %1020 = vdwg.mxu0
    %v1021 = vtanh.pop %v1018
    %v1022 = vsel %vm642, %v1021, %v1018
    %v1025 = vunpack.c.l.s4 1966171168
    %v1026 = vunpack.c.0.s8 %v1025
    %v1027 = vlaneseq
    %v1028 = vshrl.u32 %v1027, 7
    %v1029 = vsub.s32 %v1026, %v1028
    %v1030 = vrot.slane %v1022, %v1029
    %v1031 = vcombine.high %v1030, %v1030
    %v1033 = vunpack.c.l.s4 1966171168
    %v1034 = vunpack.c.0.s8 %v1033
    %v1035 = vlaneseq
    %v1036 = vshrl.u32 %v1035, 7
    %v1037 = vsub.s32 %v1034, %v1036
    %v1038 = vrot.slane %v1030, %v1037
    %v1040 = vunpack.c.l.s4 1966171168
    %v1041 = vunpack.c.0.s8 %v1040
    %v1042 = vlaneseq
    %v1043 = vshrl.u32 %v1042, 7
    %v1044 = vsub.s32 %v1041, %v1043
    %v1045 = vrot.slane %v1031, %v1044
    %1048 = vst.msk [vmem:[#allocation2 + $0x3] sm:$0x1] %vm744, %v1038
    %1049 = vst.msk [vmem:[#allocation2 + $0xb] sm:$0x1] %vm744, %v1045
    %v1050 = vsel %vm643, %v1022, 0
    %1052 = vmatprep.subr.mxu0 0.0
    %1053 = vmatpush1.msra.mxu0 %v26
    %1054 = vmatprep.subr.mxu0 0.0
    %1055 = vmatpush1.msra.mxu0 %v27
    %1056 = vmatprep.subr.mxu0 0.0
    %1057 = vmatpush1.msra.mxu0 %v28
    %1058 = vmatprep.subr.mxu0 0.0
    %1059 = vmatpush1.msra.mxu0 %v29
    %1060 = vmatprep.subr.mxu0 0.0
    %1061 = vmatpush1.msra.mxu0 %v30
    %1062 = vmatprep.subr.mxu0 0.0
    %1063 = vmatpush1.msra.mxu0 %v31
    %1064 = vmatprep.subr.mxu0 0.0
    %1065 = vmatpush1.msra.mxu0 0.0
    %1066 = vmatprep.subr.mxu0 0.0
    %1067 = vmatpush1.msra.mxu0 0.0
    %1068 = vmatprep.subr.mxu0 0.0
    %1069 = vmatpush1.msra.mxu0 0.0
    %1070 = vmatprep.subr.mxu0 0.0
    %1071 = vmatpush1.msra.mxu0 0.0
    %1072 = vmatprep.subr.mxu0 0.0
    %1073 = vmatpush1.msra.mxu0 0.0
    %1074 = vmatprep.subr.mxu0 0.0
    %1075 = vmatpush1.msra.mxu0 0.0
    %1076 = vmatprep.subr.mxu0 0.0
    %1077 = vmatpush1.msra.mxu0 0.0
    %1078 = vmatprep.subr.mxu0 0.0
    %1079 = vmatpush1.msra.mxu0 0.0
    %1080 = vmatprep.subr.mxu0 0.0
    %1081 = vmatpush1.msra.mxu0 0.0
    %1082 = vmatprep.subr.mxu0 0.0
    %1083 = vmatpush1.msra.mxu0 0.0
    %1084 = vmatprep.subr.mxu0 0.0
    %1085 = vmatpush1.msra.mxu0 0.0
    %1086 = vmatprep.subr.mxu0 0.0
    %1087 = vmatpush1.msra.mxu0 0.0
    %1088 = vmatprep.subr.mxu0 0.0
    %1089 = vmatpush1.msra.mxu0 0.0
    %1090 = vmatprep.subr.mxu0 0.0
    %1091 = vmatpush1.msra.mxu0 0.0
    %1092 = vmatprep.subr.mxu0 0.0
    %1093 = vmatpush1.msra.mxu0 0.0
    %1094 = vmatprep.subr.mxu0 0.0
    %1095 = vmatpush1.msra.mxu0 0.0
    %1096 = vmatprep.subr.mxu0 0.0
    %1097 = vmatpush1.msra.mxu0 0.0
    %1098 = vmatprep.subr.mxu0 0.0
    %1099 = vmatpush1.msra.mxu0 0.0
    %1100 = vmatprep.subr.mxu0 0.0
    %1101 = vmatpush1.msra.mxu0 0.0
    %1102 = vmatprep.subr.mxu0 0.0
    %1103 = vmatpush1.msra.mxu0 0.0
    %1104 = vmatprep.subr.mxu0 0.0
    %1105 = vmatpush1.msra.mxu0 0.0
    %1106 = vmatprep.subr.mxu0 0.0
    %1107 = vmatpush1.msra.mxu0 0.0
    %1108 = vmatprep.subr.mxu0 0.0
    %1109 = vmatpush1.msra.mxu0 0.0
    %1110 = vmatprep.subr.mxu0 0.0
    %1111 = vmatpush1.msra.mxu0 0.0
    %1112 = vmatprep.subr.mxu0 0.0
    %1113 = vmatpush1.msra.mxu0 0.0
    %1114 = vmatprep.subr.mxu0 0.0
    %1115 = vmatpush1.msra.mxu0 0.0
    %1116 = vmatprep.mubr.f32.mxu0 0.0
    %1117 = vmatmul.mubr.f32.gmra.mrb[0].mxu0 %v1050
    %v1118 = vpop.f32.mrb[0].mxu0
    %v1119 = vadd.f32 %v412, %v1118
    %v1120 = vpop.f32.mrb[0].mxu0
    %1121 = vdwg.mxu0
    %v1122 = vtanh.pop %v1119
    %v1123 = vsel %vm642, %v1122, %v1119
    %v1126 = vunpack.c.l.s4 1966171168
    %v1127 = vunpack.c.0.s8 %v1126
    %v1128 = vlaneseq
    %v1129 = vshrl.u32 %v1128, 7
    %v1130 = vsub.s32 %v1127, %v1129
    %v1131 = vrot.slane %v1123, %v1130
    %v1132 = vcombine.high %v1131, %v1131
    %v1134 = vunpack.c.l.s4 1966171168
    %v1135 = vunpack.c.0.s8 %v1134
    %v1136 = vlaneseq
    %v1137 = vshrl.u32 %v1136, 7
    %v1138 = vsub.s32 %v1135, %v1137
    %v1139 = vrot.slane %v1131, %v1138
    %v1141 = vunpack.c.l.s4 1966171168
    %v1142 = vunpack.c.0.s8 %v1141
    %v1143 = vlaneseq
    %v1144 = vshrl.u32 %v1143, 7
    %v1145 = vsub.s32 %v1142, %v1144
    %v1146 = vrot.slane %v1132, %v1145
    %1149 = vst.msk [vmem:[#allocation2 + $0x4] sm:$0x1] %vm744, %v1139
    %1150 = vst.msk [vmem:[#allocation2 + $0xc] sm:$0x1] %vm744, %v1146
    %v1151 = vsel %vm643, %v1123, 0
    %1153 = vmatprep.subr.mxu0 0.0
    %1154 = vmatpush1.msra.mxu0 %v26
    %1155 = vmatprep.subr.mxu0 0.0
    %1156 = vmatpush1.msra.mxu0 %v27
    %1157 = vmatprep.subr.mxu0 0.0
    %1158 = vmatpush1.msra.mxu0 %v28
    %1159 = vmatprep.subr.mxu0 0.0
    %1160 = vmatpush1.msra.mxu0 %v29
    %1161 = vmatprep.subr.mxu0 0.0
    %1162 = vmatpush1.msra.mxu0 %v30
    %1163 = vmatprep.subr.mxu0 0.0
    %1164 = vmatpush1.msra.mxu0 %v31
    %1165 = vmatprep.subr.mxu0 0.0
    %1166 = vmatpush1.msra.mxu0 0.0
    %1167 = vmatprep.subr.mxu0 0.0
    %1168 = vmatpush1.msra.mxu0 0.0
    %1169 = vmatprep.subr.mxu0 0.0
    %1170 = vmatpush1.msra.mxu0 0.0
    %1171 = vmatprep.subr.mxu0 0.0
    %1172 = vmatpush1.msra.mxu0 0.0
    %1173 = vmatprep.subr.mxu0 0.0
    %1174 = vmatpush1.msra.mxu0 0.0
    %1175 = vmatprep.subr.mxu0 0.0
    %1176 = vmatpush1.msra.mxu0 0.0
    %1177 = vmatprep.subr.mxu0 0.0
    %1178 = vmatpush1.msra.mxu0 0.0
    %1179 = vmatprep.subr.mxu0 0.0
    %1180 = vmatpush1.msra.mxu0 0.0
    %1181 = vmatprep.subr.mxu0 0.0
    %1182 = vmatpush1.msra.mxu0 0.0
    %1183 = vmatprep.subr.mxu0 0.0
    %1184 = vmatpush1.msra.mxu0 0.0
    %1185 = vmatprep.subr.mxu0 0.0
    %1186 = vmatpush1.msra.mxu0 0.0
    %1187 = vmatprep.subr.mxu0 0.0
    %1188 = vmatpush1.msra.mxu0 0.0
    %1189 = vmatprep.subr.mxu0 0.0
    %1190 = vmatpush1.msra.mxu0 0.0
    %1191 = vmatprep.subr.mxu0 0.0
    %1192 = vmatpush1.msra.mxu0 0.0
    %1193 = vmatprep.subr.mxu0 0.0
    %1194 = vmatpush1.msra.mxu0 0.0
    %1195 = vmatprep.subr.mxu0 0.0
    %1196 = vmatpush1.msra.mxu0 0.0
    %1197 = vmatprep.subr.mxu0 0.0
    %1198 = vmatpush1.msra.mxu0 0.0
    %1199 = vmatprep.subr.mxu0 0.0
    %1200 = vmatpush1.msra.mxu0 0.0
    %1201 = vmatprep.subr.mxu0 0.0
    %1202 = vmatpush1.msra.mxu0 0.0
    %1203 = vmatprep.subr.mxu0 0.0
    %1204 = vmatpush1.msra.mxu0 0.0
    %1205 = vmatprep.subr.mxu0 0.0
    %1206 = vmatpush1.msra.mxu0 0.0
    %1207 = vmatprep.subr.mxu0 0.0
    %1208 = vmatpush1.msra.mxu0 0.0
    %1209 = vmatprep.subr.mxu0 0.0
    %1210 = vmatpush1.msra.mxu0 0.0
    %1211 = vmatprep.subr.mxu0 0.0
    %1212 = vmatpush1.msra.mxu0 0.0
    %1213 = vmatprep.subr.mxu0 0.0
    %1214 = vmatpush1.msra.mxu0 0.0
    %1215 = vmatprep.subr.mxu0 0.0
    %1216 = vmatpush1.msra.mxu0 0.0
    %1217 = vmatprep.mubr.f32.mxu0 0.0
    %1218 = vmatmul.mubr.f32.gmra.mrb[0].mxu0 %v1151
    %v1219 = vpop.f32.mrb[0].mxu0
    %v1220 = vadd.f32 %v487, %v1219
    %v1221 = vpop.f32.mrb[0].mxu0
    %1222 = vdwg.mxu0
    %v1223 = vtanh.pop %v1220
    %v1224 = vsel %vm642, %v1223, %v1220
    %v1227 = vunpack.c.l.s4 1966171168
    %v1228 = vunpack.c.0.s8 %v1227
    %v1229 = vlaneseq
    %v1230 = vshrl.u32 %v1229, 7
    %v1231 = vsub.s32 %v1228, %v1230
    %v1232 = vrot.slane %v1224, %v1231
    %v1233 = vcombine.high %v1232, %v1232
    %v1235 = vunpack.c.l.s4 1966171168
    %v1236 = vunpack.c.0.s8 %v1235
    %v1237 = vlaneseq
    %v1238 = vshrl.u32 %v1237, 7
    %v1239 = vsub.s32 %v1236, %v1238
    %v1240 = vrot.slane %v1232, %v1239
    %v1242 = vunpack.c.l.s4 1966171168
    %v1243 = vunpack.c.0.s8 %v1242
    %v1244 = vlaneseq
    %v1245 = vshrl.u32 %v1244, 7
    %v1246 = vsub.s32 %v1243, %v1245
    %v1247 = vrot.slane %v1233, %v1246
    %1250 = vst.msk [vmem:[#allocation2 + $0x5] sm:$0x1] %vm744, %v1240
    %1251 = vst.msk [vmem:[#allocation2 + $0xd] sm:$0x1] %vm744, %v1247
    %v1252 = vsel %vm643, %v1224, 0
    %1254 = vmatprep.subr.mxu0 0.0
    %1255 = vmatpush1.msra.mxu0 %v26
    %1256 = vmatprep.subr.mxu0 0.0
    %1257 = vmatpush1.msra.mxu0 %v27
    %1258 = vmatprep.subr.mxu0 0.0
    %1259 = vmatpush1.msra.mxu0 %v28
    %1260 = vmatprep.subr.mxu0 0.0
    %1261 = vmatpush1.msra.mxu0 %v29
    %1262 = vmatprep.subr.mxu0 0.0
    %1263 = vmatpush1.msra.mxu0 %v30
    %1264 = vmatprep.subr.mxu0 0.0
    %1265 = vmatpush1.msra.mxu0 %v31
    %1266 = vmatprep.subr.mxu0 0.0
    %1267 = vmatpush1.msra.mxu0 0.0
    %1268 = vmatprep.subr.mxu0 0.0
    %1269 = vmatpush1.msra.mxu0 0.0
    %1270 = vmatprep.subr.mxu0 0.0
    %1271 = vmatpush1.msra.mxu0 0.0
    %1272 = vmatprep.subr.mxu0 0.0
    %1273 = vmatpush1.msra.mxu0 0.0
    %1274 = vmatprep.subr.mxu0 0.0
    %1275 = vmatpush1.msra.mxu0 0.0
    %1276 = vmatprep.subr.mxu0 0.0
    %1277 = vmatpush1.msra.mxu0 0.0
    %1278 = vmatprep.subr.mxu0 0.0
    %1279 = vmatpush1.msra.mxu0 0.0
    %1280 = vmatprep.subr.mxu0 0.0
    %1281 = vmatpush1.msra.mxu0 0.0
    %1282 = vmatprep.subr.mxu0 0.0
    %1283 = vmatpush1.msra.mxu0 0.0
    %1284 = vmatprep.subr.mxu0 0.0
    %1285 = vmatpush1.msra.mxu0 0.0
    %1286 = vmatprep.subr.mxu0 0.0
    %1287 = vmatpush1.msra.mxu0 0.0
    %1288 = vmatprep.subr.mxu0 0.0
    %1289 = vmatpush1.msra.mxu0 0.0
    %1290 = vmatprep.subr.mxu0 0.0
    %1291 = vmatpush1.msra.mxu0 0.0
    %1292 = vmatprep.subr.mxu0 0.0
    %1293 = vmatpush1.msra.mxu0 0.0
    %1294 = vmatprep.subr.mxu0 0.0
    %1295 = vmatpush1.msra.mxu0 0.0
    %1296 = vmatprep.subr.mxu0 0.0
    %1297 = vmatpush1.msra.mxu0 0.0
    %1298 = vmatprep.subr.mxu0 0.0
    %1299 = vmatpush1.msra.mxu0 0.0
    %1300 = vmatprep.subr.mxu0 0.0
    %1301 = vmatpush1.msra.mxu0 0.0
    %1302 = vmatprep.subr.mxu0 0.0
    %1303 = vmatpush1.msra.mxu0 0.0
    %1304 = vmatprep.subr.mxu0 0.0
    %1305 = vmatpush1.msra.mxu0 0.0
    %1306 = vmatprep.subr.mxu0 0.0
    %1307 = vmatpush1.msra.mxu0 0.0
    %1308 = vmatprep.subr.mxu0 0.0
    %1309 = vmatpush1.msra.mxu0 0.0
    %1310 = vmatprep.subr.mxu0 0.0
    %1311 = vmatpush1.msra.mxu0 0.0
    %1312 = vmatprep.subr.mxu0 0.0
    %1313 = vmatpush1.msra.mxu0 0.0
    %1314 = vmatprep.subr.mxu0 0.0
    %1315 = vmatpush1.msra.mxu0 0.0
    %1316 = vmatprep.subr.mxu0 0.0
    %1317 = vmatpush1.msra.mxu0 0.0
    %1318 = vmatprep.mubr.f32.mxu0 0.0
    %1319 = vmatmul.mubr.f32.gmra.mrb[0].mxu0 %v1252
    %v1320 = vpop.f32.mrb[0].mxu0
    %v1321 = vadd.f32 %v562, %v1320
    %v1322 = vpop.f32.mrb[0].mxu0
    %1323 = vdwg.mxu0
    %v1324 = vtanh.pop %v1321
    %v1325 = vsel %vm642, %v1324, %v1321
    %v1328 = vunpack.c.l.s4 1966171168
    %v1329 = vunpack.c.0.s8 %v1328
    %v1330 = vlaneseq
    %v1331 = vshrl.u32 %v1330, 7
    %v1332 = vsub.s32 %v1329, %v1331
    %v1333 = vrot.slane %v1325, %v1332
    %v1334 = vcombine.high %v1333, %v1333
    %v1336 = vunpack.c.l.s4 1966171168
    %v1337 = vunpack.c.0.s8 %v1336
    %v1338 = vlaneseq
    %v1339 = vshrl.u32 %v1338, 7
    %v1340 = vsub.s32 %v1337, %v1339
    %v1341 = vrot.slane %v1333, %v1340
    %v1343 = vunpack.c.l.s4 1966171168
    %v1344 = vunpack.c.0.s8 %v1343
    %v1345 = vlaneseq
    %v1346 = vshrl.u32 %v1345, 7
    %v1347 = vsub.s32 %v1344, %v1346
    %v1348 = vrot.slane %v1334, %v1347
    %1351 = vst.msk [vmem:[#allocation2 + $0x6] sm:$0x1] %vm744, %v1341
    %1352 = vst.msk [vmem:[#allocation2 + $0xe] sm:$0x1] %vm744, %v1348
    %v1353 = vsel %vm643, %v1325, 0
    %1355 = vmatprep.subr.mxu0 0.0
    %1356 = vmatpush1.msra.mxu0 %v26
    %1357 = vmatprep.subr.mxu0 0.0
    %1358 = vmatpush1.msra.mxu0 %v27
    %1359 = vmatprep.subr.mxu0 0.0
    %1360 = vmatpush1.msra.mxu0 %v28
    %1361 = vmatprep.subr.mxu0 0.0
    %1362 = vmatpush1.msra.mxu0 %v29
    %1363 = vmatprep.subr.mxu0 0.0
    %1364 = vmatpush1.msra.mxu0 %v30
    %1365 = vmatprep.subr.mxu0 0.0
    %1366 = vmatpush1.msra.mxu0 %v31
    %1367 = vmatprep.subr.mxu0 0.0
    %1368 = vmatpush1.msra.mxu0 0.0
    %1369 = vmatprep.subr.mxu0 0.0
    %1370 = vmatpush1.msra.mxu0 0.0
    %1371 = vmatprep.subr.mxu0 0.0
    %1372 = vmatpush1.msra.mxu0 0.0
    %1373 = vmatprep.subr.mxu0 0.0
    %1374 = vmatpush1.msra.mxu0 0.0
    %1375 = vmatprep.subr.mxu0 0.0
    %1376 = vmatpush1.msra.mxu0 0.0
    %1377 = vmatprep.subr.mxu0 0.0
    %1378 = vmatpush1.msra.mxu0 0.0
    %1379 = vmatprep.subr.mxu0 0.0
    %1380 = vmatpush1.msra.mxu0 0.0
    %1381 = vmatprep.subr.mxu0 0.0
    %1382 = vmatpush1.msra.mxu0 0.0
    %1383 = vmatprep.subr.mxu0 0.0
    %1384 = vmatpush1.msra.mxu0 0.0
    %1385 = vmatprep.subr.mxu0 0.0
    %1386 = vmatpush1.msra.mxu0 0.0
    %1387 = vmatprep.subr.mxu0 0.0
    %1388 = vmatpush1.msra.mxu0 0.0
    %1389 = vmatprep.subr.mxu0 0.0
    %1390 = vmatpush1.msra.mxu0 0.0
    %1391 = vmatprep.subr.mxu0 0.0
    %1392 = vmatpush1.msra.mxu0 0.0
    %1393 = vmatprep.subr.mxu0 0.0
    %1394 = vmatpush1.msra.mxu0 0.0
    %1395 = vmatprep.subr.mxu0 0.0
    %1396 = vmatpush1.msra.mxu0 0.0
    %1397 = vmatprep.subr.mxu0 0.0
    %1398 = vmatpush1.msra.mxu0 0.0
    %1399 = vmatprep.subr.mxu0 0.0
    %1400 = vmatpush1.msra.mxu0 0.0
    %1401 = vmatprep.subr.mxu0 0.0
    %1402 = vmatpush1.msra.mxu0 0.0
    %1403 = vmatprep.subr.mxu0 0.0
    %1404 = vmatpush1.msra.mxu0 0.0
    %1405 = vmatprep.subr.mxu0 0.0
    %1406 = vmatpush1.msra.mxu0 0.0
    %1407 = vmatprep.subr.mxu0 0.0
    %1408 = vmatpush1.msra.mxu0 0.0
    %1409 = vmatprep.subr.mxu0 0.0
    %1410 = vmatpush1.msra.mxu0 0.0
    %1411 = vmatprep.subr.mxu0 0.0
    %1412 = vmatpush1.msra.mxu0 0.0
    %1413 = vmatprep.subr.mxu0 0.0
    %1414 = vmatpush1.msra.mxu0 0.0
    %1415 = vmatprep.subr.mxu0 0.0
    %1416 = vmatpush1.msra.mxu0 0.0
    %1417 = vmatprep.subr.mxu0 0.0
    %1418 = vmatpush1.msra.mxu0 0.0
    %1419 = vmatprep.mubr.f32.mxu0 0.0
    %1420 = vmatmul.mubr.f32.gmra.mrb[0].mxu0 %v1353
    %v1421 = vpop.f32.mrb[0].mxu0
    %v1422 = vadd.f32 %v637, %v1421
    %v1423 = vpop.f32.mrb[0].mxu0
    %1424 = vdwg.mxu0
    %v1425 = vtanh.pop %v1422
    %v1426 = vsel %vm642, %v1425, %v1422
    %v1429 = vunpack.c.l.s4 1966171168
    %v1430 = vunpack.c.0.s8 %v1429
    %v1431 = vlaneseq
    %v1432 = vshrl.u32 %v1431, 7
    %v1433 = vsub.s32 %v1430, %v1432
    %v1434 = vrot.slane %v1426, %v1433
    %v1435 = vcombine.high %v1434, %v1434
    %v1437 = vunpack.c.l.s4 1966171168
    %v1438 = vunpack.c.0.s8 %v1437
    %v1439 = vlaneseq
    %v1440 = vshrl.u32 %v1439, 7
    %v1441 = vsub.s32 %v1438, %v1440
    %v1442 = vrot.slane %v1434, %v1441
    %v1444 = vunpack.c.l.s4 1966171168
    %v1445 = vunpack.c.0.s8 %v1444
    %v1446 = vlaneseq
    %v1447 = vshrl.u32 %v1446, 7
    %v1448 = vsub.s32 %v1445, %v1447
    %v1449 = vrot.slane %v1435, %v1448
    %1452 = vst.msk [vmem:[#allocation2 + $0x7] sm:$0x1] %vm744, %v1442
    %1453 = vst.msk [vmem:[#allocation2 + $0xf] sm:$0x1] %vm744, %v1449
    %1454 = vrot.lane.b32.xlu0 %v1426, 96
    %v1455 = vpop.permute.xlu0 %1454
    %vm1457 = vcmask 123904
    %1458 = vst.msk [vmem:[#allocation6] sm:$0x3] %vm1457, %v1455
    %v1459 = vld [vmem:[%s3] sm:$0xff]
    %v1460 = vld [vmem:[%s3 + $0x8] sm:$0xff]
    %v1461 = vld [vmem:[%s3 + $0x10] sm:$0xff]
    %v1462 = vld [vmem:[%s3 + $0x18] sm:$0xff]
    %v1463 = vld [vmem:[%s4] sm:$0x1]
    %v1465 = vlaneseq
    %v1466 = vshrl.u32 %v1465, 7
    %v1467 = vsub.s32 0, %v1466
    %v1468 = vrot.slane %v1463, %v1467
    %vm1470 = vcmask 261120
    %v1471 = vsel %vm1470, %v1426, 0
    %1473 = vmatprep.subr.mxu0 0.0
    %1474 = vmatpush1.msra.mxu0 %v1459
    %1475 = vmatprep.subr.mxu0 0.0
    %1476 = vmatpush1.msra.mxu0 %v1460
    %1477 = vmatprep.subr.mxu0 0.0
    %1478 = vmatpush1.msra.mxu0 %v1461
    %1479 = vmatprep.subr.mxu0 0.0
    %1480 = vmatpush1.msra.mxu0 %v1462
    %1481 = vmatprep.subr.mxu0 0.0
    %1482 = vmatpush1.msra.mxu0 0.0
    %1483 = vmatprep.subr.mxu0 0.0
    %1484 = vmatpush1.msra.mxu0 0.0
    %1485 = vmatprep.subr.mxu0 0.0
    %1486 = vmatpush1.msra.mxu0 0.0
    %1487 = vmatprep.subr.mxu0 0.0
    %1488 = vmatpush1.msra.mxu0 0.0
    %1489 = vmatprep.subr.mxu0 0.0
    %1490 = vmatpush1.msra.mxu0 0.0
    %1491 = vmatprep.subr.mxu0 0.0
    %1492 = vmatpush1.msra.mxu0 0.0
    %1493 = vmatprep.subr.mxu0 0.0
    %1494 = vmatpush1.msra.mxu0 0.0
    %1495 = vmatprep.subr.mxu0 0.0
    %1496 = vmatpush1.msra.mxu0 0.0
    %1497 = vmatprep.subr.mxu0 0.0
    %1498 = vmatpush1.msra.mxu0 0.0
    %1499 = vmatprep.subr.mxu0 0.0
    %1500 = vmatpush1.msra.mxu0 0.0
    %1501 = vmatprep.subr.mxu0 0.0
    %1502 = vmatpush1.msra.mxu0 0.0
    %1503 = vmatprep.subr.mxu0 0.0
    %1504 = vmatpush1.msra.mxu0 0.0
    %1505 = vmatprep.subr.mxu0 0.0
    %1506 = vmatpush1.msra.mxu0 0.0
    %1507 = vmatprep.subr.mxu0 0.0
    %1508 = vmatpush1.msra.mxu0 0.0
    %1509 = vmatprep.subr.mxu0 0.0
    %1510 = vmatpush1.msra.mxu0 0.0
    %1511 = vmatprep.subr.mxu0 0.0
    %1512 = vmatpush1.msra.mxu0 0.0
    %1513 = vmatprep.subr.mxu0 0.0
    %1514 = vmatpush1.msra.mxu0 0.0
    %1515 = vmatprep.subr.mxu0 0.0
    %1516 = vmatpush1.msra.mxu0 0.0
    %1517 = vmatprep.subr.mxu0 0.0
    %1518 = vmatpush1.msra.mxu0 0.0
    %1519 = vmatprep.subr.mxu0 0.0
    %1520 = vmatpush1.msra.mxu0 0.0
    %1521 = vmatprep.subr.mxu0 0.0
    %1522 = vmatpush1.msra.mxu0 0.0
    %1523 = vmatprep.subr.mxu0 0.0
    %1524 = vmatpush1.msra.mxu0 0.0
    %1525 = vmatprep.subr.mxu0 0.0
    %1526 = vmatpush1.msra.mxu0 0.0
    %1527 = vmatprep.subr.mxu0 0.0
    %1528 = vmatpush1.msra.mxu0 0.0
    %1529 = vmatprep.subr.mxu0 0.0
    %1530 = vmatpush1.msra.mxu0 0.0
    %1531 = vmatprep.subr.mxu0 0.0
    %1532 = vmatpush1.msra.mxu0 0.0
    %1533 = vmatprep.subr.mxu0 0.0
    %1534 = vmatpush1.msra.mxu0 0.0
    %1535 = vmatprep.subr.mxu0 0.0
    %1536 = vmatpush1.msra.mxu0 0.0
    %1537 = vmatprep.mubr.f32.mxu0 0.0
    %1538 = vmatmul.mubr.f32.gmra.mrb[0].mxu0 %v1471
    %v1539 = vpop.f32.mrb[0].mxu0
    %v1540 = vadd.f32 %v1468, %v1539
    %v1541 = vpop.f32.mrb[0].mxu0
    %1542 = vdwg.mxu0
    %vm1543 = vcmp.eq.s32.totalorder %v641, 2
    %v1544 = vmax.f32 %v1540, 0.0
    %v1545 = vmin.f32 %v1544, 1.0
    %v1546 = vmax.f32 %v1540, -1.0
    %v1547 = vmin.f32 %v1546, 1.0
    %v1548 = vsel %vm1543, %v1545, %v1547
    %vm1549 = vcmask 33792
    %1550 = vst.msk [vmem:[#allocation4] sm:$0x3] %vm1549, %v1548
    // Predicated region
    $region22: #{lmu_policy_forward.1} parent=1 // pred_check
      _
    $region23: #{lmu_policy_forward.1} parent=1 // pred_check_branch
      %1552 = sbr.rel (0) target = $region25
    $region24: #{lmu_policy_forward.1} parent=1 // pred_region
      %s1554 = ssub.s32 256, 256
      %1555 = vsyncadd [#allocation3], %s1554
      %s1556 = sshll.u32 [#allocation2], 4
      %s1557 = int_to_ptr.vmem [resolvable:$true] %s1556
      %1562 = dma.vmem_to_hbm [thread:$0]  %s1557, 256, %s5, [#allocation3], 128, 128, 8
    $region25: #{lmu_policy_forward.1} parent=1 // pred_fallthru
      _
    // Predicated region
    $region26: #{lmu_policy_forward.1} parent=1 // pred_check
      _
    $region27: #{lmu_policy_forward.1} parent=1 // pred_check_branch
      %1564 = sbr.rel (0) target = $region29
    $region28: #{lmu_policy_forward.1} parent=1 // pred_region
      %s1566 = ssub.s32 32, 32
      %1567 = vsyncadd [#allocation5], %s1566
      %s1569 = sshll.u32 [#allocation4], 4
      %s1570 = int_to_ptr.vmem [resolvable:$true] %s1569
      %1572 = dma.vmem_to_hbm [thread:$0]  %s1570, 32, %s6, [#allocation5]
    $region29: #{lmu_policy_forward.1} parent=1 // pred_fallthru
      _
    // Predicated region
    $region30: #{lmu_policy_forward.1} parent=1 // pred_check
      _
    $region31: #{lmu_policy_forward.1} parent=1 // pred_check_branch
      %1574 = sbr.rel (0) target = $region33
    $region32: #{lmu_policy_forward.1} parent=1 // pred_region
      %s1576 = ssub.s32 32, 32
      %1577 = vsyncadd [#allocation5], %s1576
      %s1579 = sshll.u32 [#allocation6], 4
      %s1580 = int_to_ptr.vmem [resolvable:$true] %s1579
      %1582 = dma.vmem_to_hbm [thread:$0]  %s1580, 32, %s7, [#allocation5]
    $region33: #{lmu_policy_forward.1} parent=1 // pred_fallthru
      _
    // Predicated region
    $region34: #{lmu_policy_forward.1} parent=1 // pred_check
      _
    $region35: #{lmu_policy_forward.1} parent=1 // pred_check_branch
      %1584 = sbr.rel (0) target = $region37
    $region36: #{lmu_policy_forward.1} parent=1 // pred_region
      %1585 = dma.done [#allocation3], 256
    $region37: #{lmu_policy_forward.1} parent=1 // pred_fallthru
      _
    // Predicated region
    $region38: #{lmu_policy_forward.1} parent=1 // pred_check
      _
    $region39: #{lmu_policy_forward.1} parent=1 // pred_check_branch
      %1587 = sbr.rel (0) target = $region41
    $region40: #{lmu_policy_forward.1} parent=1 // pred_region
      %1588 = dma.done [#allocation5], 32
    $region41: #{lmu_policy_forward.1} parent=1 // pred_fallthru
      _
    // Predicated region
    $region42: #{lmu_policy_forward.1} parent=1 // pred_check
      _
    $region43: #{lmu_policy_forward.1} parent=1 // pred_check_branch
      %1590 = sbr.rel (0) target = $region45
    $region44: #{lmu_policy_forward.1} parent=1 // pred_region
      %1591 = dma.done [#allocation5], 32
    $region45: #{lmu_policy_forward.1} parent=1 // pred_fallthru
      _
    %1592 = vsyncpa [#allocation3], 1
    %1593 = vsyncpa [#allocation5], 1

</llo_original>
